<compile_context>
chip_gen: v5e
topology: v5e:2x2
jax: 0.10.0
libtpu: 0.0.40
codegen_flags: <defaults>
</compile_context>

<pallas_src>
import math

import jax
import jax.numpy as jnp
from jax.experimental import pallas as pl
from jax.experimental.pallas import tpu as pltpu


def _round_up(x, m):
    return -(-x // m) * m


# ---------------------------------------------------------------------------
# Glue: im2col identical to torch.nn.Unfold ordering (channel-major, then
# kernel row, then kernel col; output sites row-major).
# ---------------------------------------------------------------------------
def _unfold(x, k, padding):
    B, C, H, W = x.shape
    xp = jnp.pad(x, ((0, 0), (0, 0), (padding, padding), (padding, padding)))
    Ho = H + 2 * padding - k + 1
    Wo = W + 2 * padding - k + 1
    patches = []
    for i in range(k):
        for j in range(k):
            patches.append(xp[:, :, i:i + Ho, j:j + Wo])
    p = jnp.stack(patches, axis=2)                  # (B, C, k*k, Ho, Wo)
    return p.reshape(B, C * k * k, Ho * Wo), Ho, Wo


# ---------------------------------------------------------------------------
# Best-effort hardware queries (safe fallbacks when unavailable).
# ---------------------------------------------------------------------------
def _vmem_capacity_bytes():
    try:
        return int(pltpu.get_tpu_info().vmem_capacity_bytes)
    except Exception:
        return 64 << 20        # v7x per-TensorCore physical VMEM (the smallest)


def _num_tensorcores():
    # v7x has 2 TensorCores sharing "parallel" grid axes; v5e/v6e have 1.
    try:
        info = pltpu.get_tpu_info()
        for name in ("num_cores", "num_tensorcores", "tensorcores_per_chip",
                     "core_count"):
            v = getattr(info, name, None)
            if isinstance(v, int) and v > 0:
                return max(1, min(int(v), 2))
    except Exception:
        pass
    return 1


# ---------------------------------------------------------------------------
# Tiling heuristics (review items: lane-tile per generation, chunked K).
# ---------------------------------------------------------------------------
def _choose_lane_tiling(total, K, o_pad, n_cores, vmem_bytes):
    lane = 128
    total_p = _round_up(max(total, 1), lane)
    # Rough per-lane-column VMEM cost (bytes): double-buffered y/out blocks
    # plus in-kernel temporaries (normalized y, one squared z chunk, acc).
    per_col = 4 * (3 * K + 5 * o_pad + 2 * min(16 * o_pad, 256))
    budget = max(vmem_bytes // 4, 8 << 20)
    cap = min(2048, max(lane, (budget // per_col) // lane * lane))
    if total_p <= n_cores * cap:
        # Small problem: one grid step per TensorCore (1 on v5e/v6e, 2 on v7x)
        # -- the kernel is per-grid-step-overhead bound at these sizes.
        num_tiles = max(1, min(n_cores, total_p // lane))
        lane_tile = _round_up(-(-total_p // num_tiles), lane)
    else:
        lane_tile = cap
        num_tiles = -(-total_p // lane_tile)
        if n_cores > 1:
            num_tiles = _round_up(num_tiles, n_cores)   # balanced "parallel" split
    return lane_tile, num_tiles


def _choose_k_chunk(K, o_pad, lane_tile):
    # Keep each (kc*o_pad, lane_tile) f32 z-chunk <= ~128 KiB so the square +
    # K-reduce epilogue lives in vregs instead of spilling to VMEM.
    max_rows = ((128 << 10) // (4 * lane_tile)) // o_pad * o_pad
    kc = max(1, min(K, max(max_rows, o_pad) // o_pad, 16))
    n_chunks = -(-K // kc)
    return kc, n_chunks


# ---------------------------------------------------------------------------
# Pallas kernel: one grid step == one lane tile of (batch*spatial) columns.
#   - normalize columns by unbiased std over the K patch features (torch.std)
#   - chunked residual projection: accumulate mean_K (R_o y)_k^2 per channel
#   - exponent / normalize post-map; one dense (Opad, lane_tile) store
# ---------------------------------------------------------------------------
def _make_srn_kernel(o_pad, K, kc, n_chunks, normalize, exponent):
    chunk_rows = kc * o_pad
    em1 = math.exp(-1.0)
    inv_km1 = 1.0 / float(max(K - 1, 1))
    inv_k = 1.0 / float(K)
    post_scale = 1.0 / (1.0 - em1)

    def kernel(y_ref, r_ref, o_ref):
        y = y_ref[...]                                            # (K, T) f32
        if normalize:
            # torch.std (unbiased) over the K patch features; the reference
            # divides by std WITHOUT centering, so the mean only feeds var.
            # TODO(synk): bug-compatible with torch: no eps, var==0 -> inf.
            mean = jnp.mean(y, axis=0, keepdims=True)
            var = jnp.sum((y - mean) ** 2, axis=0, keepdims=True) * inv_km1
            y = y * jax.lax.rsqrt(var)
        t = y.shape[-1]

        # Rows of R are ordered (k, o) with Opad % 8 == 0, so each chunk's
        # reshape is a tile-aligned view and the k-reduction is plain vreg adds.
        def chunk_reduce(z):
            zz = z * z
            return jnp.sum(zz.reshape(kc, o_pad, t), axis=0)      # (Opad, T)

        if n_chunks == 1:
            acc = chunk_reduce(jnp.dot(r_ref[...], y,
                                       preferred_element_type=jnp.float32))
        else:
            def body(c, acc):
                start = pl.multiple_of(c * chunk_rows, chunk_rows)
                z = jnp.dot(r_ref[pl.ds(start, chunk_rows), :], y,
                            preferred_element_type=jnp.float32)   # (kc*Opad, T)
                return acc + chunk_reduce(z)
            acc = jax.lax.fori_loop(0, n_chunks, body,
                                    jnp.zeros((o_pad, t), jnp.float32),
                                    unroll=True)

        err = acc * inv_k                                          # (Opad, T)
        if exponent:
            out = (jnp.exp(-err) - em1) * post_scale - 0.5
        elif normalize:
            out = 1.0 - err
        else:
            out = -err
        o_ref[...] = out.astype(o_ref.dtype)                       # dense store

    return kernel


# ---------------------------------------------------------------------------
# Wrapper: parameter preprocessing (polynomial design matrix, normal-equations
# solve, residual projector) stays in JAX glue; the hot path (normalization,
# chunked residual matmul, MSE reduction, exp map) runs in the Pallas kernel.
# ---------------------------------------------------------------------------
def srn_layer(y2, weights, *, padding=0, epsilon=1e-4, num_slices=2, degree=4,
              exponent=True, normalize=True, noise_key=None):
    Ochan, C, k, _, S = weights.shape
    assert S == num_slices

    y, Ho, Wo = _unfold(y2, k, padding)                         # (B, K, L)
    B, K, L = y.shape

    # y = y + epsilon * randn_like(y)   (noise drawn from the JAX PRNG)
    if noise_key is not None:
        y = y + epsilon * jax.random.normal(noise_key, y.shape, dtype=y.dtype)

    # Polynomial design matrix [1, s, s^2, ..., s^degree] per channel -> (O, K, D)
    Xv = weights.reshape(Ochan, K, S)
    cols = [Xv] + [Xv ** (i + 2) for i in range(degree - 1)]
    X = jnp.concatenate(cols, axis=2)
    X = jnp.concatenate([jnp.ones((Ochan, K, 1), X.dtype), X], axis=2)
    D = X.shape[2]

    # TODO(synk): torch.linalg.inv has no Pallas equivalent; the tiny (O, D, D)
    # normal-equations solve stays in JAX glue.  Use solve (not an explicit
    # inverse) plus a tiny relative jitter: the f32 Gram matrix is near-singular
    # for xavier(gain=0.01) weights raised to powers up to `degree`.
    Xt = jnp.swapaxes(X, 1, 2)                                  # (O, D, K)
    G = jnp.einsum('okd,oke->ode', X, X)                        # (O, D, D)
    jitter = 1e-6 * (jnp.trace(G, axis1=1, axis2=2) / D)[:, None, None]
    M = jnp.linalg.solve(G + jitter * jnp.eye(D, dtype=G.dtype), Xt)  # (O, D, K)

    # Residual projector per channel: R_o = I - X_o M_o  ->  (O, K, K)
    R = jnp.eye(K, dtype=jnp.float32)[None] - jnp.einsum('okd,odj->okj', X, M)

    # --- tiling decisions ----------------------------------------------------
    o_pad = _round_up(Ochan, 8)
    n_cores = _num_tensorcores()
    vmem_phys = _vmem_capacity_bytes()
    total = B * L
    lane_tile, num_tiles = _choose_lane_tiling(total, K, o_pad, n_cores, vmem_phys)
    kc, n_chunks = _choose_k_chunk(K, o_pad, lane_tile)
    k_pad = n_chunks * kc
    chunk_rows = kc * o_pad
    r_rows = k_pad * o_pad
    Lp = num_tiles * lane_tile

    # Pad channels to the sublane tile and reorder projector rows to (k, o);
    # pad the k axis to a whole number of chunks with zero rows (they add 0).
    if o_pad != Ochan:
        R = jnp.concatenate([R, jnp.zeros((o_pad - Ochan, K, K), R.dtype)], axis=0)
    Rt = jnp.transpose(R, (1, 0, 2))                            # (K, Opad, K)
    if k_pad != K:
        Rt = jnp.concatenate(
            [Rt, jnp.zeros((k_pad - K, o_pad, K), Rt.dtype)], axis=0)
    R_stacked = Rt.reshape(r_rows, K)

    # Lane-dense layout: fold batch into lanes, pad to the lane-tile multiple.
    y2d = jnp.transpose(y, (1, 0, 2)).reshape(K, total)         # (K, B*L)
    if Lp != total:
        # edge-pad so padded columns keep nonzero variance (no NaN work).
        y2d = jnp.pad(y2d, ((0, 0), (0, Lp - total)), mode='edge')

    # Explicit VMEM budget (review: re-derive per chip; v7x = 64 MiB physical).
    need = 4 * lane_tile * (2 * K + 2 * o_pad                    # y/out blocks (x2)
                            + K + 2 * chunk_rows + 2 * o_pad)    # kernel temporaries
    need += r_rows * _round_up(K, 128) * 4                       # single-buffered R
    vmem_limit = int(min(vmem_phys * 9 // 10, max(2 * need, 32 << 20)))

    kernel = _make_srn_kernel(o_pad, K, kc, n_chunks, normalize, exponent)
    out = pl.pallas_call(
        kernel,
        out_shape=jax.ShapeDtypeStruct((o_pad, Lp), jnp.float32),
        grid_spec=pltpu.PrefetchScalarGridSpec(
            num_scalar_prefetch=0,
            grid=(num_tiles,),
            in_specs=[
                pl.BlockSpec((K, lane_tile), lambda t: (0, t)),      # y columns (f32)
                pl.BlockSpec((r_rows, K), lambda t: (0, 0),          # projector
                             pipeline_mode=pl.Buffered(1)),          # grid-invariant
            ],
            out_specs=pl.BlockSpec((o_pad, lane_tile), lambda t: (0, t)),
        ),
        compiler_params=pltpu.CompilerParams(
            dimension_semantics=("parallel",),
            vmem_limit_bytes=vmem_limit,
        ),
    )(y2d.astype(jnp.float32), R_stacked.astype(jnp.float32))

    # Strip channel/lane padding, un-fold batch from lanes, restore NCHW.
    out = out[:Ochan, :total].reshape(Ochan, B, L)
    out = jnp.transpose(out, (1, 0, 2)).reshape(B, Ochan, Ho, Wo)
    return out


if __name__ == "__main__":
    key = jax.random.PRNGKey(0)
    kw, kx, kn = jax.random.split(key, 3)

    # Small shapes consistent with the module (NCHW input, 3x3 kernel, no pad).
    B, C, H, W = 2, 4, 16, 16
    Ochan, ksize, S, degree = 8, 3, 2, 4

    # Deterministic xavier_normal_(gain=0.01) equivalent for the 5D weight.
    fan_in = C * ksize * ksize * S
    fan_out = Ochan * ksize * ksize * S
    std = 0.01 * math.sqrt(2.0 / (fan_in + fan_out))
    weights = std * jax.random.normal(kw, (Ochan, C, ksize, ksize, S),
                                      dtype=jnp.float32)

    x = jax.random.normal(kx, (B, C, H, W), dtype=jnp.float32)

    out = srn_layer(x, weights, padding=0, epsilon=1e-4, num_slices=S,
                    degree=degree, exponent=True, normalize=True, noise_key=kn)
    jax.block_until_ready(out)
    assert out.shape == (B, Ochan, H - ksize + 1, W - ksize + 1)
    assert bool(jnp.all(jnp.isfinite(out)))
    print("KERNEL_OK")
</pallas_src>

<mosaic_0001>
module attributes {stable_mosaic.version = 11 : i64} {
  func.func @kernel(%arg0: i32, %arg1: memref<36x512xf32, #tpu.memory_space<vmem>>, %arg2: memref<320x36xf32, #tpu.memory_space<vmem>>, %arg3: memref<8x512xf32, #tpu.memory_space<vmem>>) attributes {dimension_semantics = [#tpu.dimension_semantics<parallel>], iteration_bounds = array<i64: 1>, scalar_prefetch = 0 : i64, scratch_operands = 0 : i64, tpu.core_type = #tpu.core_type<tc>, window_params = [{transform_indices = @transform_0, window_bounds = array<i64: 36, 512>}, {pipeline_mode = #tpu.pipeline_mode<synchronous>, transform_indices = @transform_1, window_bounds = array<i64: 320, 36>}, {transform_indices = @transform_2, window_bounds = array<i64: 8, 512>}]} {
    %c0 = arith.constant 0 : index
    %c0_0 = arith.constant 0 : index
    %0 = vector.load %arg1[%c0, %c0_0] : memref<36x512xf32, #tpu.memory_space<vmem>>, vector<36x512xf32>
    %cst = arith.constant dense<0.000000e+00> : vector<512xf32>
    %1 = vector.multi_reduction <add>, %0, %cst [0] : vector<36x512xf32> to vector<512xf32>
    %2 = vector.shape_cast %1 : vector<512xf32> to vector<1x512xf32>
    %cst_1 = arith.constant 3.600000e+01 : f32
    %3 = vector.broadcast %cst_1 : f32 to vector<1x512xf32>
    %4 = arith.divf %2, %3 : vector<1x512xf32>
    %5 = vector.broadcast %4 : vector<1x512xf32> to vector<36x512xf32>
    %6 = arith.subf %0, %5 : vector<36x512xf32>
    %7 = arith.mulf %6, %6 : vector<36x512xf32>
    %cst_2 = arith.constant dense<0.000000e+00> : vector<512xf32>
    %8 = vector.multi_reduction <add>, %7, %cst_2 [0] : vector<36x512xf32> to vector<512xf32>
    %9 = vector.shape_cast %8 : vector<512xf32> to vector<1x512xf32>
    %cst_3 = arith.constant 0.0285714287 : f32
    %10 = vector.broadcast %cst_3 : f32 to vector<1x512xf32>
    %11 = arith.mulf %9, %10 : vector<1x512xf32>
    %12 = math.rsqrt %11 : vector<1x512xf32>
    %13 = vector.broadcast %12 : vector<1x512xf32> to vector<36x512xf32>
    %14 = arith.mulf %0, %13 : vector<36x512xf32>
    %cst_4 = arith.constant 0.000000e+00 : f32
    %15 = vector.broadcast %cst_4 : f32 to vector<8x512xf32>
    %c0_i32 = arith.constant 0 : i32
    %c64_i32 = arith.constant 64 : i32
    %16 = arith.muli %c0_i32, %c64_i32 : i32
    %17 = tpu.assume_multiple %16, 64 : i32
    %18 = arith.index_cast %17 : i32 to index
    %c0_5 = arith.constant 0 : index
    %19 = vector.load %arg2[%18, %c0_5] : memref<320x36xf32, #tpu.memory_space<vmem>>, vector<64x36xf32>
    %cst_6 = arith.constant dense<0.000000e+00> : vector<64x512xf32>
    %20 = tpu.matmul %19, %14, %cst_6 {dimension_numbers = #tpu.dot_dimension_numbers<[1], [0], [0], [1], [0, 0, 1, 1], [], []>} : vector<64x36xf32>, vector<36x512xf32>, vector<64x512xf32> -> vector<64x512xf32>
    %21 = arith.mulf %20, %20 : vector<64x512xf32>
    %22 = vector.shape_cast %21 : vector<64x512xf32> to vector<8x8x512xf32>
    %cst_7 = arith.constant dense<0.000000e+00> : vector<8x512xf32>
    %23 = vector.multi_reduction <add>, %22, %cst_7 [0] : vector<8x8x512xf32> to vector<8x512xf32>
    %24 = arith.addf %15, %23 : vector<8x512xf32>
    %c1_i32 = arith.constant 1 : i32
    %c64_i32_8 = arith.constant 64 : i32
    %25 = arith.muli %c1_i32, %c64_i32_8 : i32
    %26 = tpu.assume_multiple %25, 64 : i32
    %27 = arith.index_cast %26 : i32 to index
    %c0_9 = arith.constant 0 : index
    %28 = vector.load %arg2[%27, %c0_9] : memref<320x36xf32, #tpu.memory_space<vmem>>, vector<64x36xf32>
    %cst_10 = arith.constant dense<0.000000e+00> : vector<64x512xf32>
    %29 = tpu.matmul %28, %14, %cst_10 {dimension_numbers = #tpu.dot_dimension_numbers<[1], [0], [0], [1], [0, 0, 1, 1], [], []>} : vector<64x36xf32>, vector<36x512xf32>, vector<64x512xf32> -> vector<64x512xf32>
    %30 = arith.mulf %29, %29 : vector<64x512xf32>
    %31 = vector.shape_cast %30 : vector<64x512xf32> to vector<8x8x512xf32>
    %cst_11 = arith.constant dense<0.000000e+00> : vector<8x512xf32>
    %32 = vector.multi_reduction <add>, %31, %cst_11 [0] : vector<8x8x512xf32> to vector<8x512xf32>
    %33 = arith.addf %24, %32 : vector<8x512xf32>
    %c2_i32 = arith.constant 2 : i32
    %c64_i32_12 = arith.constant 64 : i32
    %34 = arith.muli %c2_i32, %c64_i32_12 : i32
    %35 = tpu.assume_multiple %34, 64 : i32
    %36 = arith.index_cast %35 : i32 to index
    %c0_13 = arith.constant 0 : index
    %37 = vector.load %arg2[%36, %c0_13] : memref<320x36xf32, #tpu.memory_space<vmem>>, vector<64x36xf32>
    %cst_14 = arith.constant dense<0.000000e+00> : vector<64x512xf32>
    %38 = tpu.matmul %37, %14, %cst_14 {dimension_numbers = #tpu.dot_dimension_numbers<[1], [0], [0], [1], [0, 0, 1, 1], [], []>} : vector<64x36xf32>, vector<36x512xf32>, vector<64x512xf32> -> vector<64x512xf32>
    %39 = arith.mulf %38, %38 : vector<64x512xf32>
    %40 = vector.shape_cast %39 : vector<64x512xf32> to vector<8x8x512xf32>
    %cst_15 = arith.constant dense<0.000000e+00> : vector<8x512xf32>
    %41 = vector.multi_reduction <add>, %40, %cst_15 [0] : vector<8x8x512xf32> to vector<8x512xf32>
    %42 = arith.addf %33, %41 : vector<8x512xf32>
    %c3_i32 = arith.constant 3 : i32
    %c64_i32_16 = arith.constant 64 : i32
    %43 = arith.muli %c3_i32, %c64_i32_16 : i32
    %44 = tpu.assume_multiple %43, 64 : i32
    %45 = arith.index_cast %44 : i32 to index
    %c0_17 = arith.constant 0 : index
    %46 = vector.load %arg2[%45, %c0_17] : memref<320x36xf32, #tpu.memory_space<vmem>>, vector<64x36xf32>
    %cst_18 = arith.constant dense<0.000000e+00> : vector<64x512xf32>
    %47 = tpu.matmul %46, %14, %cst_18 {dimension_numbers = #tpu.dot_dimension_numbers<[1], [0], [0], [1], [0, 0, 1, 1], [], []>} : vector<64x36xf32>, vector<36x512xf32>, vector<64x512xf32> -> vector<64x512xf32>
    %48 = arith.mulf %47, %47 : vector<64x512xf32>
    %49 = vector.shape_cast %48 : vector<64x512xf32> to vector<8x8x512xf32>
    %cst_19 = arith.constant dense<0.000000e+00> : vector<8x512xf32>
    %50 = vector.multi_reduction <add>, %49, %cst_19 [0] : vector<8x8x512xf32> to vector<8x512xf32>
    %51 = arith.addf %42, %50 : vector<8x512xf32>
    %c4_i32 = arith.constant 4 : i32
    %c64_i32_20 = arith.constant 64 : i32
    %52 = arith.muli %c4_i32, %c64_i32_20 : i32
    %53 = tpu.assume_multiple %52, 64 : i32
    %54 = arith.index_cast %53 : i32 to index
    %c0_21 = arith.constant 0 : index
    %55 = vector.load %arg2[%54, %c0_21] : memref<320x36xf32, #tpu.memory_space<vmem>>, vector<64x36xf32>
    %cst_22 = arith.constant dense<0.000000e+00> : vector<64x512xf32>
    %56 = tpu.matmul %55, %14, %cst_22 {dimension_numbers = #tpu.dot_dimension_numbers<[1], [0], [0], [1], [0, 0, 1, 1], [], []>} : vector<64x36xf32>, vector<36x512xf32>, vector<64x512xf32> -> vector<64x512xf32>
    %57 = arith.mulf %56, %56 : vector<64x512xf32>
    %58 = vector.shape_cast %57 : vector<64x512xf32> to vector<8x8x512xf32>
    %cst_23 = arith.constant dense<0.000000e+00> : vector<8x512xf32>
    %59 = vector.multi_reduction <add>, %58, %cst_23 [0] : vector<8x8x512xf32> to vector<8x512xf32>
    %60 = arith.addf %51, %59 : vector<8x512xf32>
    %c5_i32 = arith.constant 5 : i32
    %cst_24 = arith.constant 0.027777778 : f32
    %61 = vector.broadcast %cst_24 : f32 to vector<8x512xf32>
    %62 = arith.mulf %60, %61 : vector<8x512xf32>
    %cst_25 = arith.constant 0.000000e+00 : f32
    %63 = vector.broadcast %cst_25 : f32 to vector<8x512xf32>
    %64 = arith.subf %63, %62 : vector<8x512xf32>
    %65 = math.exp %64 : vector<8x512xf32>
    %cst_26 = arith.constant 0.36787945 : f32
    %66 = vector.broadcast %cst_26 : f32 to vector<8x512xf32>
    %67 = arith.subf %65, %66 : vector<8x512xf32>
    %cst_27 = arith.constant 1.58197665 : f32
    %68 = vector.broadcast %cst_27 : f32 to vector<8x512xf32>
    %69 = arith.mulf %67, %68 : vector<8x512xf32>
    %cst_28 = arith.constant 5.000000e-01 : f32
    %70 = vector.broadcast %cst_28 : f32 to vector<8x512xf32>
    %71 = arith.subf %69, %70 : vector<8x512xf32>
    %c0_29 = arith.constant 0 : index
    %c0_30 = arith.constant 0 : index
    %72 = vector.load %arg3[%c0_29, %c0_30] : memref<8x512xf32, #tpu.memory_space<vmem>>, vector<8x512xf32>
    tpu.vector_store %arg3[%c0_29, %c0_30], %71 {strides = array<i32>} : memref<8x512xf32, #tpu.memory_space<vmem>>, vector<8x512xf32>,
    return
  }
  func.func @transform_0(%arg0: i32) -> (i32, i32) {
    %c0_i32 = arith.constant 0 : i32
    %c0_i32_0 = arith.constant 0 : i32
    return %c0_i32, %arg0 : i32, i32
  }
  func.func @transform_1(%arg0: i32) -> (i32, i32) {
    %c0_i32 = arith.constant 0 : i32
    %c0_i32_0 = arith.constant 0 : i32
    %c0_i32_1 = arith.constant 0 : i32
    return %c0_i32, %c0_i32_0 : i32, i32
  }
  func.func @transform_2(%arg0: i32) -> (i32, i32) {
    %c0_i32 = arith.constant 0 : i32
    %c0_i32_0 = arith.constant 0 : i32
    return %c0_i32, %arg0 : i32, i32
  }
}

</mosaic_0001>

<llo_original>
// kernel: tpu_custom_call.1
$region0: #{tpu_custom_call.1}
  #allocation0 [shape = 'u32[]', space=smem, size = 0x4, offset = 0x4, fixed_abs, tag = 'smem constant byte address 0x4 - core index']
  #allocation1 [shape = 'u32[72,128]{1,0:T(1,128)}', space=vmem, size = 0x9000, scoped, tag = 'internal scratch']
  %s0 = inlined_call_operand.vmem [shape: f32[36,512], index: 0, kind: input, shape index: {}]
  %s1 = inlined_call_operand.vmem [shape: f32[320,36], index: 1, kind: input, shape index: {}]
  %s2 = inlined_call_operand.hbm [shape: f32[8,512], index: 2, kind: output, shape index: {}]
  %s3 = sld [smem:[#allocation0]]
  $region18: #{tpu_custom_call.1} parent=0
    _
  %s5 = ssub.s32 1, %s3
  %s6 = scalar_select 0, %s5, %s3
  $region1: #{tpu_custom_call.1} parent=0
    #allocation2 [shape = 'u8[16384]{0}', space=vmem, size = 0x4000, scoped, tag = 'output window, operand 0, single buffered']
    #allocation3 [shape = 's32[1]{0}', space=sflag, size = 0x4, scoped, tag = 'scoped memory for tpu_custom_call.1']
    %7 = vsyncpa [#allocation3], 0
    // Predicated region
    $region2: #{tpu_custom_call.1} parent=1 // pred_check
      _
    $region3: #{tpu_custom_call.1} parent=1 // pred_check_branch
      %9 = sbr.rel (0) target = $region5
    $region4: #{tpu_custom_call.1} parent=1 // pred_region
      _
    $region5: #{tpu_custom_call.1} parent=1 // pred_fallthru
      _
    // Predicated region
    $region6: #{tpu_custom_call.1} parent=1 // pred_check
      _
    $region7: #{tpu_custom_call.1} parent=1 // pred_check_branch
      %11 = sbr.rel (0) target = $region9
    $region8: #{tpu_custom_call.1} parent=1 // pred_region
      _
    $region9: #{tpu_custom_call.1} parent=1 // pred_fallthru
      _
    %v12 = vld [vmem:[%s0] sm:$0xff]
    %v13 = vld [vmem:[%s0 + $0x8] sm:$0xff]
    %v14 = vld [vmem:[%s0 + $0x10] sm:$0xff]
    %v15 = vld [vmem:[%s0 + $0x18] sm:$0xff]
    %v16 = vld [vmem:[%s0 + $0x20] sm:$0xff]
    %v17 = vld [vmem:[%s0 + $0x28] sm:$0xff]
    %v18 = vld [vmem:[%s0 + $0x30] sm:$0xff]
    %v19 = vld [vmem:[%s0 + $0x38] sm:$0xff]
    %v20 = vld [vmem:[%s0 + $0x40] sm:$0xff]
    %v21 = vld [vmem:[%s0 + $0x48] sm:$0xff]
    %v22 = vld [vmem:[%s0 + $0x50] sm:$0xff]
    %v23 = vld [vmem:[%s0 + $0x58] sm:$0xff]
    %v24 = vld [vmem:[%s0 + $0x60] sm:$0xff]
    %v25 = vld [vmem:[%s0 + $0x68] sm:$0xff]
    %v26 = vld [vmem:[%s0 + $0x70] sm:$0xff]
    %v27 = vld [vmem:[%s0 + $0x78] sm:$0xff]
    %v28 = vld [vmem:[%s0 + $0x80] sm:$0xf]
    %v29 = vld [vmem:[%s0 + $0x88] sm:$0xf]
    %v30 = vld [vmem:[%s0 + $0x90] sm:$0xf]
    %v31 = vld [vmem:[%s0 + $0x98] sm:$0xf]
    %v32 = vadd.f32 %v12, %v16
    %v33 = vadd.f32 %v32, %v20
    %v34 = vadd.f32 %v33, %v24
    %vm35 = vcmask 1043456
    %v36 = vsel %vm35, %v28, 0.0
    %v37 = vadd.f32 %v34, %v36
    %v38 = vrot.slane %v37, 4
    %v39 = vadd.f32 %v37, %v38
    %v40 = vrot.slane %v39, 2
    %v41 = vadd.f32 %v39, %v40
    %v42 = vrot.slane %v41, 1
    %v43 = vadd.f32 %v41, %v42
    %v44 = vadd.f32 %v13, %v17
    %v45 = vadd.f32 %v44, %v21
    %v46 = vadd.f32 %v45, %v25
    %v47 = vsel %vm35, %v29, 0.0
    %v48 = vadd.f32 %v46, %v47
    %v49 = vrot.slane %v48, 4
    %v50 = vadd.f32 %v48, %v49
    %v51 = vrot.slane %v50, 2
    %v52 = vadd.f32 %v50, %v51
    %v53 = vrot.slane %v52, 1
    %v54 = vadd.f32 %v52, %v53
    %v55 = vadd.f32 %v14, %v18
    %v56 = vadd.f32 %v55, %v22
    %v57 = vadd.f32 %v56, %v26
    %v58 = vsel %vm35, %v30, 0.0
    %v59 = vadd.f32 %v57, %v58
    %v60 = vrot.slane %v59, 4
    %v61 = vadd.f32 %v59, %v60
    %v62 = vrot.slane %v61, 2
    %v63 = vadd.f32 %v61, %v62
    %v64 = vrot.slane %v63, 1
    %v65 = vadd.f32 %v63, %v64
    %v66 = vadd.f32 %v15, %v19
    %v67 = vadd.f32 %v66, %v23
    %v68 = vadd.f32 %v67, %v27
    %v69 = vsel %vm35, %v31, 0.0
    %v70 = vadd.f32 %v68, %v69
    %v71 = vrot.slane %v70, 4
    %v72 = vadd.f32 %v70, %v71
    %v73 = vrot.slane %v72, 2
    %v74 = vadd.f32 %v72, %v73
    %v75 = vrot.slane %v74, 1
    %v76 = vadd.f32 %v74, %v75
    %v77 = vrcp.pop 36.0
    %v78 = vmul.f32 36.0, %v77
    %v79 = vsub.f32 1.0, %v78
    %v80 = vmul.f32 %v77, %v79
    %v81 = vadd.f32 %v77, %v80
    %vm82 = vweird.f32 %v77
    %v83 = vsel %vm82, %v77, %v81
    %v84 = vmul.f32 %v43, %v83
    %v85 = vmul.f32 %v54, %v83
    %v86 = vmul.f32 %v65, %v83
    %v87 = vmul.f32 %v76, %v83
    %v88 = vsub.f32 %v12, %v84
    %v89 = vsub.f32 %v13, %v85
    %v90 = vsub.f32 %v14, %v86
    %v91 = vsub.f32 %v15, %v87
    %v92 = vsub.f32 %v16, %v84
    %v93 = vsub.f32 %v17, %v85
    %v94 = vsub.f32 %v18, %v86
    %v95 = vsub.f32 %v19, %v87
    %v96 = vsub.f32 %v20, %v84
    %v97 = vsub.f32 %v21, %v85
    %v98 = vsub.f32 %v22, %v86
    %v99 = vsub.f32 %v23, %v87
    %v100 = vsub.f32 %v24, %v84
    %v101 = vsub.f32 %v25, %v85
    %v102 = vsub.f32 %v26, %v86
    %v103 = vsub.f32 %v27, %v87
    %v104 = vsub.f32 %v28, %v84
    %v105 = vsub.f32 %v29, %v85
    %v106 = vsub.f32 %v30, %v86
    %v107 = vsub.f32 %v31, %v87
    %v108 = vmul.f32 %v88, %v88
    %v109 = vmul.f32 %v89, %v89
    %v110 = vmul.f32 %v90, %v90
    %v111 = vmul.f32 %v91, %v91
    %v112 = vmul.f32 %v92, %v92
    %v113 = vmul.f32 %v93, %v93
    %v114 = vmul.f32 %v94, %v94
    %v115 = vmul.f32 %v95, %v95
    %v116 = vmul.f32 %v96, %v96
    %v117 = vmul.f32 %v97, %v97
    %v118 = vmul.f32 %v98, %v98
    %v119 = vmul.f32 %v99, %v99
    %v120 = vmul.f32 %v100, %v100
    %v121 = vmul.f32 %v101, %v101
    %v122 = vmul.f32 %v102, %v102
    %v123 = vmul.f32 %v103, %v103
    %v124 = vmul.f32 %v104, %v104
    %v125 = vmul.f32 %v105, %v105
    %v126 = vmul.f32 %v106, %v106
    %v127 = vmul.f32 %v107, %v107
    %v128 = vadd.f32 %v108, %v112
    %v129 = vadd.f32 %v128, %v116
    %v130 = vadd.f32 %v129, %v120
    %v131 = vsel %vm35, %v124, 0.0
    %v132 = vadd.f32 %v130, %v131
    %v133 = vrot.slane %v132, 4
    %v134 = vadd.f32 %v132, %v133
    %v135 = vrot.slane %v134, 2
    %v136 = vadd.f32 %v134, %v135
    %v137 = vrot.slane %v136, 1
    %v138 = vadd.f32 %v136, %v137
    %v139 = vadd.f32 %v109, %v113
    %v140 = vadd.f32 %v139, %v117
    %v141 = vadd.f32 %v140, %v121
    %v142 = vsel %vm35, %v125, 0.0
    %v143 = vadd.f32 %v141, %v142
    %v144 = vrot.slane %v143, 4
    %v145 = vadd.f32 %v143, %v144
    %v146 = vrot.slane %v145, 2
    %v147 = vadd.f32 %v145, %v146
    %v148 = vrot.slane %v147, 1
    %v149 = vadd.f32 %v147, %v148
    %v150 = vadd.f32 %v110, %v114
    %v151 = vadd.f32 %v150, %v118
    %v152 = vadd.f32 %v151, %v122
    %v153 = vsel %vm35, %v126, 0.0
    %v154 = vadd.f32 %v152, %v153
    %v155 = vrot.slane %v154, 4
    %v156 = vadd.f32 %v154, %v155
    %v157 = vrot.slane %v156, 2
    %v158 = vadd.f32 %v156, %v157
    %v159 = vrot.slane %v158, 1
    %v160 = vadd.f32 %v158, %v159
    %v161 = vadd.f32 %v111, %v115
    %v162 = vadd.f32 %v161, %v119
    %v163 = vadd.f32 %v162, %v123
    %v164 = vsel %vm35, %v127, 0.0
    %v165 = vadd.f32 %v163, %v164
    %v166 = vrot.slane %v165, 4
    %v167 = vadd.f32 %v165, %v166
    %v168 = vrot.slane %v167, 2
    %v169 = vadd.f32 %v167, %v168
    %v170 = vrot.slane %v169, 1
    %v171 = vadd.f32 %v169, %v170
    %v172 = vmul.f32 %v138, 0.028571429
    %v173 = vmul.f32 %v149, 0.028571429
    %v174 = vmul.f32 %v160, 0.028571429
    %v175 = vmul.f32 %v171, 0.028571429
    %v176 = vrsqrt.pop %v172
    %v177 = vmul.f32 %v176, %v172
    %v178 = vmul.f32 %v177, %v176
    %v179 = vmul.f32 0.5, %v178
    %v180 = vsub.f32 1.5, %v179
    %v181 = vmul.f32 %v176, %v180
    %vm182 = vweird.f32 %v172
    %vm183 = vweird.f32 %v176
    %vm184 = vmor %vm182, %vm183
    %v185 = vsel %vm184, %v176, %v181
    %v186 = vrsqrt.pop %v173
    %v187 = vmul.f32 %v186, %v173
    %v188 = vmul.f32 %v187, %v186
    %v189 = vmul.f32 0.5, %v188
    %v190 = vsub.f32 1.5, %v189
    %v191 = vmul.f32 %v186, %v190
    %vm192 = vweird.f32 %v173
    %vm193 = vweird.f32 %v186
    %vm194 = vmor %vm192, %vm193
    %v195 = vsel %vm194, %v186, %v191
    %v196 = vrsqrt.pop %v174
    %v197 = vmul.f32 %v196, %v174
    %v198 = vmul.f32 %v197, %v196
    %v199 = vmul.f32 0.5, %v198
    %v200 = vsub.f32 1.5, %v199
    %v201 = vmul.f32 %v196, %v200
    %vm202 = vweird.f32 %v174
    %vm203 = vweird.f32 %v196
    %vm204 = vmor %vm202, %vm203
    %v205 = vsel %vm204, %v196, %v201
    %v206 = vrsqrt.pop %v175
    %v207 = vmul.f32 %v206, %v175
    %v208 = vmul.f32 %v207, %v206
    %v209 = vmul.f32 0.5, %v208
    %v210 = vsub.f32 1.5, %v209
    %v211 = vmul.f32 %v206, %v210
    %vm212 = vweird.f32 %v175
    %vm213 = vweird.f32 %v206
    %vm214 = vmor %vm212, %vm213
    %v215 = vsel %vm214, %v206, %v211
    %v216 = vmul.f32 %v12, %v185
    %v217 = vmul.f32 %v13, %v195
    %v218 = vmul.f32 %v14, %v205
    %v219 = vmul.f32 %v15, %v215
    %v220 = vmul.f32 %v16, %v185
    %v221 = vmul.f32 %v17, %v195
    %v222 = vmul.f32 %v18, %v205
    %v223 = vmul.f32 %v19, %v215
    %v224 = vmul.f32 %v20, %v185
    %v225 = vmul.f32 %v21, %v195
    %v226 = vmul.f32 %v22, %v205
    %v227 = vmul.f32 %v23, %v215
    %v228 = vmul.f32 %v24, %v185
    %v229 = vmul.f32 %v25, %v195
    %v230 = vmul.f32 %v26, %v205
    %v231 = vmul.f32 %v27, %v215
    %v232 = vmul.f32 %v28, %v185
    %v233 = vmul.f32 %v29, %v195
    %v234 = vmul.f32 %v30, %v205
    %v235 = vmul.f32 %v31, %v215
    %v236 = vld [vmem:[%s1] sm:$0xff]
    %v237 = vld [vmem:[%s1 + $0x8] sm:$0xff]
    %v238 = vld [vmem:[%s1 + $0x10] sm:$0xff]
    %v239 = vld [vmem:[%s1 + $0x18] sm:$0xff]
    %v240 = vld [vmem:[%s1 + $0x20] sm:$0xff]
    %v241 = vld [vmem:[%s1 + $0x28] sm:$0xff]
    %v242 = vld [vmem:[%s1 + $0x30] sm:$0xff]
    %v243 = vld [vmem:[%s1 + $0x38] sm:$0xff]
    %vm244 = vcmask 293888
    %v246 = vsel %vm244, %v236, 0
    %v249 = vsel %vm244, %v237, 0
    %v252 = vsel %vm244, %v238, 0
    %v255 = vsel %vm244, %v239, 0
    %v258 = vsel %vm244, %v240, 0
    %v261 = vsel %vm244, %v241, 0
    %v264 = vsel %vm244, %v242, 0
    %v267 = vsel %vm244, %v243, 0
    %v270 = vsel %vm35, %v232, 0
    %v273 = vsel %vm35, %v233, 0
    %v276 = vsel %vm35, %v234, 0
    %v279 = vsel %vm35, %v235, 0
    %281 = vmatpush.msra.mxu0 0.0
    %282 = vmatpush.msra.mxu0 0.0
    %283 = vmatpush.msra.mxu0 0.0
    %284 = vmatpush.msra.mxu0 0.0
    %285 = vmatpush.msra.mxu0 0.0
    %286 = vmatpush.msra.mxu0 0.0
    %287 = vmatpush.msra.mxu0 0.0
    %288 = vmatpush.msra.mxu0 0.0
    %289 = vmatpush.msra.mxu0 0.0
    %290 = vmatpush.msra.mxu0 0.0
    %291 = vmatpush.msra.mxu0 0.0
    %292 = vmatpush.msra.mxu0 %v270
    %293 = vmatpush.msra.mxu0 %v228
    %294 = vmatpush.msra.mxu0 %v224
    %295 = vmatpush.msra.mxu0 %v220
    %296 = vmatpush.msra.mxu0 %v216
    %297 = vmatmul.f32.gmra.mxu0 %v246
    %v298 = vpop.f32.mrf.mxu0
    %v299 = vadd.f32 0.0, %v298
    %300 = vmatmul.f32.gmra.mxu0 %v249
    %v301 = vpop.f32.mrf.mxu0
    %v302 = vadd.f32 0.0, %v301
    %303 = vmatmul.f32.gmra.mxu0 %v252
    %v304 = vpop.f32.mrf.mxu0
    %v305 = vadd.f32 0.0, %v304
    %306 = vmatmul.f32.gmra.mxu0 %v255
    %v307 = vpop.f32.mrf.mxu0
    %v308 = vadd.f32 0.0, %v307
    %309 = vmatmul.f32.gmra.mxu0 %v258
    %v310 = vpop.f32.mrf.mxu0
    %v311 = vadd.f32 0.0, %v310
    %312 = vmatmul.f32.gmra.mxu0 %v261
    %v313 = vpop.f32.mrf.mxu0
    %v314 = vadd.f32 0.0, %v313
    %315 = vmatmul.f32.gmra.mxu0 %v264
    %v316 = vpop.f32.mrf.mxu0
    %v317 = vadd.f32 0.0, %v316
    %318 = vmatmul.f32.gmra.mxu0 %v267
    %v319 = vpop.f32.mrf.mxu0
    %v320 = vadd.f32 0.0, %v319
    %321 = vdwg.mxu0
    %322 = vmatpush.msra.mxu0 0.0
    %323 = vmatpush.msra.mxu0 0.0
    %324 = vmatpush.msra.mxu0 0.0
    %325 = vmatpush.msra.mxu0 0.0
    %326 = vmatpush.msra.mxu0 0.0
    %327 = vmatpush.msra.mxu0 0.0
    %328 = vmatpush.msra.mxu0 0.0
    %329 = vmatpush.msra.mxu0 0.0
    %330 = vmatpush.msra.mxu0 0.0
    %331 = vmatpush.msra.mxu0 0.0
    %332 = vmatpush.msra.mxu0 0.0
    %333 = vmatpush.msra.mxu0 %v273
    %334 = vmatpush.msra.mxu0 %v229
    %335 = vmatpush.msra.mxu0 %v225
    %336 = vmatpush.msra.mxu0 %v221
    %337 = vmatpush.msra.mxu0 %v217
    %338 = vmatmul.f32.gmra.mxu0 %v246
    %v339 = vpop.f32.mrf.mxu0
    %v340 = vadd.f32 0.0, %v339
    %341 = vmatmul.f32.gmra.mxu0 %v249
    %v342 = vpop.f32.mrf.mxu0
    %v343 = vadd.f32 0.0, %v342
    %344 = vmatmul.f32.gmra.mxu0 %v252
    %v345 = vpop.f32.mrf.mxu0
    %v346 = vadd.f32 0.0, %v345
    %347 = vmatmul.f32.gmra.mxu0 %v255
    %v348 = vpop.f32.mrf.mxu0
    %v349 = vadd.f32 0.0, %v348
    %350 = vmatmul.f32.gmra.mxu0 %v258
    %v351 = vpop.f32.mrf.mxu0
    %v352 = vadd.f32 0.0, %v351
    %353 = vmatmul.f32.gmra.mxu0 %v261
    %v354 = vpop.f32.mrf.mxu0
    %v355 = vadd.f32 0.0, %v354
    %356 = vmatmul.f32.gmra.mxu0 %v264
    %v357 = vpop.f32.mrf.mxu0
    %v358 = vadd.f32 0.0, %v357
    %359 = vmatmul.f32.gmra.mxu0 %v267
    %v360 = vpop.f32.mrf.mxu0
    %v361 = vadd.f32 0.0, %v360
    %362 = vdwg.mxu0
    %363 = vmatpush.msra.mxu0 0.0
    %364 = vmatpush.msra.mxu0 0.0
    %365 = vmatpush.msra.mxu0 0.0
    %366 = vmatpush.msra.mxu0 0.0
    %367 = vmatpush.msra.mxu0 0.0
    %368 = vmatpush.msra.mxu0 0.0
    %369 = vmatpush.msra.mxu0 0.0
    %370 = vmatpush.msra.mxu0 0.0
    %371 = vmatpush.msra.mxu0 0.0
    %372 = vmatpush.msra.mxu0 0.0
    %373 = vmatpush.msra.mxu0 0.0
    %374 = vmatpush.msra.mxu0 %v276
    %375 = vmatpush.msra.mxu0 %v230
    %376 = vmatpush.msra.mxu0 %v226
    %377 = vmatpush.msra.mxu0 %v222
    %378 = vmatpush.msra.mxu0 %v218
    %379 = vmatmul.f32.gmra.mxu0 %v246
    %v380 = vpop.f32.mrf.mxu0
    %v381 = vadd.f32 0.0, %v380
    %382 = vmatmul.f32.gmra.mxu0 %v249
    %v383 = vpop.f32.mrf.mxu0
    %v384 = vadd.f32 0.0, %v383
    %385 = vmatmul.f32.gmra.mxu0 %v252
    %v386 = vpop.f32.mrf.mxu0
    %v387 = vadd.f32 0.0, %v386
    %388 = vmatmul.f32.gmra.mxu0 %v255
    %v389 = vpop.f32.mrf.mxu0
    %v390 = vadd.f32 0.0, %v389
    %391 = vmatmul.f32.gmra.mxu0 %v258
    %v392 = vpop.f32.mrf.mxu0
    %v393 = vadd.f32 0.0, %v392
    %394 = vmatmul.f32.gmra.mxu0 %v261
    %v395 = vpop.f32.mrf.mxu0
    %v396 = vadd.f32 0.0, %v395
    %397 = vmatmul.f32.gmra.mxu0 %v264
    %v398 = vpop.f32.mrf.mxu0
    %v399 = vadd.f32 0.0, %v398
    %400 = vmatmul.f32.gmra.mxu0 %v267
    %v401 = vpop.f32.mrf.mxu0
    %v402 = vadd.f32 0.0, %v401
    %403 = vdwg.mxu0
    %404 = vmatpush.msra.mxu0 0.0
    %405 = vmatpush.msra.mxu0 0.0
    %406 = vmatpush.msra.mxu0 0.0
    %407 = vmatpush.msra.mxu0 0.0
    %408 = vmatpush.msra.mxu0 0.0
    %409 = vmatpush.msra.mxu0 0.0
    %410 = vmatpush.msra.mxu0 0.0
    %411 = vmatpush.msra.mxu0 0.0
    %412 = vmatpush.msra.mxu0 0.0
    %413 = vmatpush.msra.mxu0 0.0
    %414 = vmatpush.msra.mxu0 0.0
    %415 = vmatpush.msra.mxu0 %v279
    %416 = vmatpush.msra.mxu0 %v231
    %417 = vmatpush.msra.mxu0 %v227
    %418 = vmatpush.msra.mxu0 %v223
    %419 = vmatpush.msra.mxu0 %v219
    %420 = vmatmul.f32.gmra.mxu0 %v246
    %v421 = vpop.f32.mrf.mxu0
    %v422 = vadd.f32 0.0, %v421
    %423 = vmatmul.f32.gmra.mxu0 %v249
    %v424 = vpop.f32.mrf.mxu0
    %v425 = vadd.f32 0.0, %v424
    %426 = vmatmul.f32.gmra.mxu0 %v252
    %v427 = vpop.f32.mrf.mxu0
    %v428 = vadd.f32 0.0, %v427
    %429 = vmatmul.f32.gmra.mxu0 %v255
    %v430 = vpop.f32.mrf.mxu0
    %v431 = vadd.f32 0.0, %v430
    %432 = vmatmul.f32.gmra.mxu0 %v258
    %v433 = vpop.f32.mrf.mxu0
    %v434 = vadd.f32 0.0, %v433
    %435 = vmatmul.f32.gmra.mxu0 %v261
    %v436 = vpop.f32.mrf.mxu0
    %v437 = vadd.f32 0.0, %v436
    %438 = vmatmul.f32.gmra.mxu0 %v264
    %v439 = vpop.f32.mrf.mxu0
    %v440 = vadd.f32 0.0, %v439
    %441 = vmatmul.f32.gmra.mxu0 %v267
    %v442 = vpop.f32.mrf.mxu0
    %v443 = vadd.f32 0.0, %v442
    %444 = vdwg.mxu0
    %v445 = vmul.f32 %v299, %v299
    %v446 = vmul.f32 %v340, %v340
    %v447 = vmul.f32 %v381, %v381
    %v448 = vmul.f32 %v422, %v422
    %v449 = vmul.f32 %v302, %v302
    %v450 = vmul.f32 %v343, %v343
    %v451 = vmul.f32 %v384, %v384
    %v452 = vmul.f32 %v425, %v425
    %v453 = vmul.f32 %v305, %v305
    %v454 = vmul.f32 %v346, %v346
    %v455 = vmul.f32 %v387, %v387
    %v456 = vmul.f32 %v428, %v428
    %v457 = vmul.f32 %v308, %v308
    %v458 = vmul.f32 %v349, %v349
    %v459 = vmul.f32 %v390, %v390
    %v460 = vmul.f32 %v431, %v431
    %v461 = vmul.f32 %v311, %v311
    %v462 = vmul.f32 %v352, %v352
    %v463 = vmul.f32 %v393, %v393
    %v464 = vmul.f32 %v434, %v434
    %v465 = vmul.f32 %v314, %v314
    %v466 = vmul.f32 %v355, %v355
    %v467 = vmul.f32 %v396, %v396
    %v468 = vmul.f32 %v437, %v437
    %v469 = vmul.f32 %v317, %v317
    %v470 = vmul.f32 %v358, %v358
    %v471 = vmul.f32 %v399, %v399
    %v472 = vmul.f32 %v440, %v440
    %v473 = vmul.f32 %v320, %v320
    %v474 = vmul.f32 %v361, %v361
    %v475 = vmul.f32 %v402, %v402
    %v476 = vmul.f32 %v443, %v443
    %v477 = vadd.f32 %v445, %v449
    %v478 = vadd.f32 %v477, %v453
    %v479 = vadd.f32 %v478, %v457
    %v480 = vadd.f32 %v479, %v461
    %v481 = vadd.f32 %v480, %v465
    %v482 = vadd.f32 %v481, %v469
    %v483 = vadd.f32 %v482, %v473
    %v484 = vadd.f32 %v446, %v450
    %v485 = vadd.f32 %v484, %v454
    %v486 = vadd.f32 %v485, %v458
    %v487 = vadd.f32 %v486, %v462
    %v488 = vadd.f32 %v487, %v466
    %v489 = vadd.f32 %v488, %v470
    %v490 = vadd.f32 %v489, %v474
    %v491 = vadd.f32 %v447, %v451
    %v492 = vadd.f32 %v491, %v455
    %v493 = vadd.f32 %v492, %v459
    %v494 = vadd.f32 %v493, %v463
    %v495 = vadd.f32 %v494, %v467
    %v496 = vadd.f32 %v495, %v471
    %v497 = vadd.f32 %v496, %v475
    %v498 = vadd.f32 %v448, %v452
    %v499 = vadd.f32 %v498, %v456
    %v500 = vadd.f32 %v499, %v460
    %v501 = vadd.f32 %v500, %v464
    %v502 = vadd.f32 %v501, %v468
    %v503 = vadd.f32 %v502, %v472
    %v504 = vadd.f32 %v503, %v476
    %v505 = vadd.f32 %v483, 0.0
    %v506 = vadd.f32 %v490, 0.0
    %v507 = vadd.f32 %v497, 0.0
    %v508 = vadd.f32 %v504, 0.0
    %s509 = scalar_lea.vmem %s1, 64
    %v510 = vld [vmem:[%s509] sm:$0xff]
    %v511 = vld [vmem:[%s509 + $0x8] sm:$0xff]
    %v512 = vld [vmem:[%s509 + $0x10] sm:$0xff]
    %v513 = vld [vmem:[%s509 + $0x18] sm:$0xff]
    %v514 = vld [vmem:[%s509 + $0x20] sm:$0xff]
    %v515 = vld [vmem:[%s509 + $0x28] sm:$0xff]
    %v516 = vld [vmem:[%s509 + $0x30] sm:$0xff]
    %v517 = vld [vmem:[%s509 + $0x38] sm:$0xff]
    %v519 = vsel %vm244, %v510, 0
    %v522 = vsel %vm244, %v511, 0
    %v525 = vsel %vm244, %v512, 0
    %v528 = vsel %vm244, %v513, 0
    %v531 = vsel %vm244, %v514, 0
    %v534 = vsel %vm244, %v515, 0
    %v537 = vsel %vm244, %v516, 0
    %v540 = vsel %vm244, %v517, 0
    %542 = vmatpush.msra.mxu0 0.0
    %543 = vmatpush.msra.mxu0 0.0
    %544 = vmatpush.msra.mxu0 0.0
    %545 = vmatpush.msra.mxu0 0.0
    %546 = vmatpush.msra.mxu0 0.0
    %547 = vmatpush.msra.mxu0 0.0
    %548 = vmatpush.msra.mxu0 0.0
    %549 = vmatpush.msra.mxu0 0.0
    %550 = vmatpush.msra.mxu0 0.0
    %551 = vmatpush.msra.mxu0 0.0
    %552 = vmatpush.msra.mxu0 0.0
    %553 = vmatpush.msra.mxu0 %v270
    %554 = vmatpush.msra.mxu0 %v228
    %555 = vmatpush.msra.mxu0 %v224
    %556 = vmatpush.msra.mxu0 %v220
    %557 = vmatpush.msra.mxu0 %v216
    %558 = vmatmul.f32.gmra.mxu0 %v519
    %v559 = vpop.f32.mrf.mxu0
    %v560 = vadd.f32 0.0, %v559
    %561 = vmatmul.f32.gmra.mxu0 %v522
    %v562 = vpop.f32.mrf.mxu0
    %v563 = vadd.f32 0.0, %v562
    %564 = vmatmul.f32.gmra.mxu0 %v525
    %v565 = vpop.f32.mrf.mxu0
    %v566 = vadd.f32 0.0, %v565
    %567 = vmatmul.f32.gmra.mxu0 %v528
    %v568 = vpop.f32.mrf.mxu0
    %v569 = vadd.f32 0.0, %v568
    %570 = vmatmul.f32.gmra.mxu0 %v531
    %v571 = vpop.f32.mrf.mxu0
    %v572 = vadd.f32 0.0, %v571
    %573 = vmatmul.f32.gmra.mxu0 %v534
    %v574 = vpop.f32.mrf.mxu0
    %v575 = vadd.f32 0.0, %v574
    %576 = vmatmul.f32.gmra.mxu0 %v537
    %v577 = vpop.f32.mrf.mxu0
    %v578 = vadd.f32 0.0, %v577
    %579 = vmatmul.f32.gmra.mxu0 %v540
    %v580 = vpop.f32.mrf.mxu0
    %v581 = vadd.f32 0.0, %v580
    %582 = vdwg.mxu0
    %583 = vmatpush.msra.mxu0 0.0
    %584 = vmatpush.msra.mxu0 0.0
    %585 = vmatpush.msra.mxu0 0.0
    %586 = vmatpush.msra.mxu0 0.0
    %587 = vmatpush.msra.mxu0 0.0
    %588 = vmatpush.msra.mxu0 0.0
    %589 = vmatpush.msra.mxu0 0.0
    %590 = vmatpush.msra.mxu0 0.0
    %591 = vmatpush.msra.mxu0 0.0
    %592 = vmatpush.msra.mxu0 0.0
    %593 = vmatpush.msra.mxu0 0.0
    %594 = vmatpush.msra.mxu0 %v273
    %595 = vmatpush.msra.mxu0 %v229
    %596 = vmatpush.msra.mxu0 %v225
    %597 = vmatpush.msra.mxu0 %v221
    %598 = vmatpush.msra.mxu0 %v217
    %599 = vmatmul.f32.gmra.mxu0 %v519
    %v600 = vpop.f32.mrf.mxu0
    %v601 = vadd.f32 0.0, %v600
    %602 = vmatmul.f32.gmra.mxu0 %v522
    %v603 = vpop.f32.mrf.mxu0
    %v604 = vadd.f32 0.0, %v603
    %605 = vmatmul.f32.gmra.mxu0 %v525
    %v606 = vpop.f32.mrf.mxu0
    %v607 = vadd.f32 0.0, %v606
    %608 = vmatmul.f32.gmra.mxu0 %v528
    %v609 = vpop.f32.mrf.mxu0
    %v610 = vadd.f32 0.0, %v609
    %611 = vmatmul.f32.gmra.mxu0 %v531
    %v612 = vpop.f32.mrf.mxu0
    %v613 = vadd.f32 0.0, %v612
    %614 = vmatmul.f32.gmra.mxu0 %v534
    %v615 = vpop.f32.mrf.mxu0
    %v616 = vadd.f32 0.0, %v615
    %617 = vmatmul.f32.gmra.mxu0 %v537
    %v618 = vpop.f32.mrf.mxu0
    %v619 = vadd.f32 0.0, %v618
    %620 = vmatmul.f32.gmra.mxu0 %v540
    %v621 = vpop.f32.mrf.mxu0
    %v622 = vadd.f32 0.0, %v621
    %623 = vdwg.mxu0
    %624 = vmatpush.msra.mxu0 0.0
    %625 = vmatpush.msra.mxu0 0.0
    %626 = vmatpush.msra.mxu0 0.0
    %627 = vmatpush.msra.mxu0 0.0
    %628 = vmatpush.msra.mxu0 0.0
    %629 = vmatpush.msra.mxu0 0.0
    %630 = vmatpush.msra.mxu0 0.0
    %631 = vmatpush.msra.mxu0 0.0
    %632 = vmatpush.msra.mxu0 0.0
    %633 = vmatpush.msra.mxu0 0.0
    %634 = vmatpush.msra.mxu0 0.0
    %635 = vmatpush.msra.mxu0 %v276
    %636 = vmatpush.msra.mxu0 %v230
    %637 = vmatpush.msra.mxu0 %v226
    %638 = vmatpush.msra.mxu0 %v222
    %639 = vmatpush.msra.mxu0 %v218
    %640 = vmatmul.f32.gmra.mxu0 %v519
    %v641 = vpop.f32.mrf.mxu0
    %v642 = vadd.f32 0.0, %v641
    %643 = vmatmul.f32.gmra.mxu0 %v522
    %v644 = vpop.f32.mrf.mxu0
    %v645 = vadd.f32 0.0, %v644
    %646 = vmatmul.f32.gmra.mxu0 %v525
    %v647 = vpop.f32.mrf.mxu0
    %v648 = vadd.f32 0.0, %v647
    %649 = vmatmul.f32.gmra.mxu0 %v528
    %v650 = vpop.f32.mrf.mxu0
    %v651 = vadd.f32 0.0, %v650
    %652 = vmatmul.f32.gmra.mxu0 %v531
    %v653 = vpop.f32.mrf.mxu0
    %v654 = vadd.f32 0.0, %v653
    %655 = vmatmul.f32.gmra.mxu0 %v534
    %v656 = vpop.f32.mrf.mxu0
    %v657 = vadd.f32 0.0, %v656
    %658 = vmatmul.f32.gmra.mxu0 %v537
    %v659 = vpop.f32.mrf.mxu0
    %v660 = vadd.f32 0.0, %v659
    %661 = vmatmul.f32.gmra.mxu0 %v540
    %v662 = vpop.f32.mrf.mxu0
    %v663 = vadd.f32 0.0, %v662
    %664 = vdwg.mxu0
    %665 = vmatpush.msra.mxu0 0.0
    %666 = vmatpush.msra.mxu0 0.0
    %667 = vmatpush.msra.mxu0 0.0
    %668 = vmatpush.msra.mxu0 0.0
    %669 = vmatpush.msra.mxu0 0.0
    %670 = vmatpush.msra.mxu0 0.0
    %671 = vmatpush.msra.mxu0 0.0
    %672 = vmatpush.msra.mxu0 0.0
    %673 = vmatpush.msra.mxu0 0.0
    %674 = vmatpush.msra.mxu0 0.0
    %675 = vmatpush.msra.mxu0 0.0
    %676 = vmatpush.msra.mxu0 %v279
    %677 = vmatpush.msra.mxu0 %v231
    %678 = vmatpush.msra.mxu0 %v227
    %679 = vmatpush.msra.mxu0 %v223
    %680 = vmatpush.msra.mxu0 %v219
    %681 = vmatmul.f32.gmra.mxu0 %v519
    %v682 = vpop.f32.mrf.mxu0
    %v683 = vadd.f32 0.0, %v682
    %684 = vmatmul.f32.gmra.mxu0 %v522
    %v685 = vpop.f32.mrf.mxu0
    %v686 = vadd.f32 0.0, %v685
    %687 = vmatmul.f32.gmra.mxu0 %v525
    %v688 = vpop.f32.mrf.mxu0
    %v689 = vadd.f32 0.0, %v688
    %690 = vmatmul.f32.gmra.mxu0 %v528
    %v691 = vpop.f32.mrf.mxu0
    %v692 = vadd.f32 0.0, %v691
    %693 = vmatmul.f32.gmra.mxu0 %v531
    %v694 = vpop.f32.mrf.mxu0
    %v695 = vadd.f32 0.0, %v694
    %696 = vmatmul.f32.gmra.mxu0 %v534
    %v697 = vpop.f32.mrf.mxu0
    %v698 = vadd.f32 0.0, %v697
    %699 = vmatmul.f32.gmra.mxu0 %v537
    %v700 = vpop.f32.mrf.mxu0
    %v701 = vadd.f32 0.0, %v700
    %702 = vmatmul.f32.gmra.mxu0 %v540
    %v703 = vpop.f32.mrf.mxu0
    %v704 = vadd.f32 0.0, %v703
    %705 = vdwg.mxu0
    %v706 = vmul.f32 %v560, %v560
    %v707 = vmul.f32 %v601, %v601
    %v708 = vmul.f32 %v642, %v642
    %v709 = vmul.f32 %v683, %v683
    %v710 = vmul.f32 %v563, %v563
    %v711 = vmul.f32 %v604, %v604
    %v712 = vmul.f32 %v645, %v645
    %v713 = vmul.f32 %v686, %v686
    %v714 = vmul.f32 %v566, %v566
    %v715 = vmul.f32 %v607, %v607
    %v716 = vmul.f32 %v648, %v648
    %v717 = vmul.f32 %v689, %v689
    %v718 = vmul.f32 %v569, %v569
    %v719 = vmul.f32 %v610, %v610
    %v720 = vmul.f32 %v651, %v651
    %v721 = vmul.f32 %v692, %v692
    %v722 = vmul.f32 %v572, %v572
    %v723 = vmul.f32 %v613, %v613
    %v724 = vmul.f32 %v654, %v654
    %v725 = vmul.f32 %v695, %v695
    %v726 = vmul.f32 %v575, %v575
    %v727 = vmul.f32 %v616, %v616
    %v728 = vmul.f32 %v657, %v657
    %v729 = vmul.f32 %v698, %v698
    %v730 = vmul.f32 %v578, %v578
    %v731 = vmul.f32 %v619, %v619
    %v732 = vmul.f32 %v660, %v660
    %v733 = vmul.f32 %v701, %v701
    %v734 = vmul.f32 %v581, %v581
    %v735 = vmul.f32 %v622, %v622
    %v736 = vmul.f32 %v663, %v663
    %v737 = vmul.f32 %v704, %v704
    %v738 = vadd.f32 %v706, %v710
    %v739 = vadd.f32 %v738, %v714
    %v740 = vadd.f32 %v739, %v718
    %v741 = vadd.f32 %v740, %v722
    %v742 = vadd.f32 %v741, %v726
    %v743 = vadd.f32 %v742, %v730
    %v744 = vadd.f32 %v743, %v734
    %v745 = vadd.f32 %v707, %v711
    %v746 = vadd.f32 %v745, %v715
    %v747 = vadd.f32 %v746, %v719
    %v748 = vadd.f32 %v747, %v723
    %v749 = vadd.f32 %v748, %v727
    %v750 = vadd.f32 %v749, %v731
    %v751 = vadd.f32 %v750, %v735
    %v752 = vadd.f32 %v708, %v712
    %v753 = vadd.f32 %v752, %v716
    %v754 = vadd.f32 %v753, %v720
    %v755 = vadd.f32 %v754, %v724
    %v756 = vadd.f32 %v755, %v728
    %v757 = vadd.f32 %v756, %v732
    %v758 = vadd.f32 %v757, %v736
    %v759 = vadd.f32 %v709, %v713
    %v760 = vadd.f32 %v759, %v717
    %v761 = vadd.f32 %v760, %v721
    %v762 = vadd.f32 %v761, %v725
    %v763 = vadd.f32 %v762, %v729
    %v764 = vadd.f32 %v763, %v733
    %v765 = vadd.f32 %v764, %v737
    %v766 = vadd.f32 %v505, %v744
    %v767 = vadd.f32 %v506, %v751
    %v768 = vadd.f32 %v507, %v758
    %v769 = vadd.f32 %v508, %v765
    %s770 = scalar_lea.vmem %s1, 128
    %v771 = vld [vmem:[%s770] sm:$0xff]
    %v772 = vld [vmem:[%s770 + $0x8] sm:$0xff]
    %v773 = vld [vmem:[%s770 + $0x10] sm:$0xff]
    %v774 = vld [vmem:[%s770 + $0x18] sm:$0xff]
    %v775 = vld [vmem:[%s770 + $0x20] sm:$0xff]
    %v776 = vld [vmem:[%s770 + $0x28] sm:$0xff]
    %v777 = vld [vmem:[%s770 + $0x30] sm:$0xff]
    %v778 = vld [vmem:[%s770 + $0x38] sm:$0xff]
    %v780 = vsel %vm244, %v771, 0
    %v783 = vsel %vm244, %v772, 0
    %v786 = vsel %vm244, %v773, 0
    %v789 = vsel %vm244, %v774, 0
    %v792 = vsel %vm244, %v775, 0
    %v795 = vsel %vm244, %v776, 0
    %v798 = vsel %vm244, %v777, 0
    %v801 = vsel %vm244, %v778, 0
    %803 = vmatpush.msra.mxu0 0.0
    %804 = vmatpush.msra.mxu0 0.0
    %805 = vmatpush.msra.mxu0 0.0
    %806 = vmatpush.msra.mxu0 0.0
    %807 = vmatpush.msra.mxu0 0.0
    %808 = vmatpush.msra.mxu0 0.0
    %809 = vmatpush.msra.mxu0 0.0
    %810 = vmatpush.msra.mxu0 0.0
    %811 = vmatpush.msra.mxu0 0.0
    %812 = vmatpush.msra.mxu0 0.0
    %813 = vmatpush.msra.mxu0 0.0
    %814 = vmatpush.msra.mxu0 %v270
    %815 = vmatpush.msra.mxu0 %v228
    %816 = vmatpush.msra.mxu0 %v224
    %817 = vmatpush.msra.mxu0 %v220
    %818 = vmatpush.msra.mxu0 %v216
    %819 = vmatmul.f32.gmra.mxu0 %v780
    %v820 = vpop.f32.mrf.mxu0
    %v821 = vadd.f32 0.0, %v820
    %822 = vmatmul.f32.gmra.mxu0 %v783
    %v823 = vpop.f32.mrf.mxu0
    %v824 = vadd.f32 0.0, %v823
    %825 = vmatmul.f32.gmra.mxu0 %v786
    %v826 = vpop.f32.mrf.mxu0
    %v827 = vadd.f32 0.0, %v826
    %828 = vmatmul.f32.gmra.mxu0 %v789
    %v829 = vpop.f32.mrf.mxu0
    %v830 = vadd.f32 0.0, %v829
    %831 = vmatmul.f32.gmra.mxu0 %v792
    %v832 = vpop.f32.mrf.mxu0
    %v833 = vadd.f32 0.0, %v832
    %834 = vmatmul.f32.gmra.mxu0 %v795
    %v835 = vpop.f32.mrf.mxu0
    %v836 = vadd.f32 0.0, %v835
    %837 = vmatmul.f32.gmra.mxu0 %v798
    %v838 = vpop.f32.mrf.mxu0
    %v839 = vadd.f32 0.0, %v838
    %840 = vmatmul.f32.gmra.mxu0 %v801
    %v841 = vpop.f32.mrf.mxu0
    %v842 = vadd.f32 0.0, %v841
    %843 = vdwg.mxu0
    %844 = vmatpush.msra.mxu0 0.0
    %845 = vmatpush.msra.mxu0 0.0
    %846 = vmatpush.msra.mxu0 0.0
    %847 = vmatpush.msra.mxu0 0.0
    %848 = vmatpush.msra.mxu0 0.0
    %849 = vmatpush.msra.mxu0 0.0
    %850 = vmatpush.msra.mxu0 0.0
    %851 = vmatpush.msra.mxu0 0.0
    %852 = vmatpush.msra.mxu0 0.0
    %853 = vmatpush.msra.mxu0 0.0
    %854 = vmatpush.msra.mxu0 0.0
    %855 = vmatpush.msra.mxu0 %v273
    %856 = vmatpush.msra.mxu0 %v229
    %857 = vmatpush.msra.mxu0 %v225
    %858 = vmatpush.msra.mxu0 %v221
    %859 = vmatpush.msra.mxu0 %v217
    %860 = vmatmul.f32.gmra.mxu0 %v780
    %v861 = vpop.f32.mrf.mxu0
    %v862 = vadd.f32 0.0, %v861
    %863 = vmatmul.f32.gmra.mxu0 %v783
    %v864 = vpop.f32.mrf.mxu0
    %v865 = vadd.f32 0.0, %v864
    %866 = vmatmul.f32.gmra.mxu0 %v786
    %v867 = vpop.f32.mrf.mxu0
    %v868 = vadd.f32 0.0, %v867
    %869 = vmatmul.f32.gmra.mxu0 %v789
    %v870 = vpop.f32.mrf.mxu0
    %v871 = vadd.f32 0.0, %v870
    %872 = vmatmul.f32.gmra.mxu0 %v792
    %v873 = vpop.f32.mrf.mxu0
    %v874 = vadd.f32 0.0, %v873
    %875 = vmatmul.f32.gmra.mxu0 %v795
    %v876 = vpop.f32.mrf.mxu0
    %v877 = vadd.f32 0.0, %v876
    %878 = vmatmul.f32.gmra.mxu0 %v798
    %v879 = vpop.f32.mrf.mxu0
    %v880 = vadd.f32 0.0, %v879
    %881 = vmatmul.f32.gmra.mxu0 %v801
    %v882 = vpop.f32.mrf.mxu0
    %v883 = vadd.f32 0.0, %v882
    %884 = vdwg.mxu0
    %885 = vmatpush.msra.mxu0 0.0
    %886 = vmatpush.msra.mxu0 0.0
    %887 = vmatpush.msra.mxu0 0.0
    %888 = vmatpush.msra.mxu0 0.0
    %889 = vmatpush.msra.mxu0 0.0
    %890 = vmatpush.msra.mxu0 0.0
    %891 = vmatpush.msra.mxu0 0.0
    %892 = vmatpush.msra.mxu0 0.0
    %893 = vmatpush.msra.mxu0 0.0
    %894 = vmatpush.msra.mxu0 0.0
    %895 = vmatpush.msra.mxu0 0.0
    %896 = vmatpush.msra.mxu0 %v276
    %897 = vmatpush.msra.mxu0 %v230
    %898 = vmatpush.msra.mxu0 %v226
    %899 = vmatpush.msra.mxu0 %v222
    %900 = vmatpush.msra.mxu0 %v218
    %901 = vmatmul.f32.gmra.mxu0 %v780
    %v902 = vpop.f32.mrf.mxu0
    %v903 = vadd.f32 0.0, %v902
    %904 = vmatmul.f32.gmra.mxu0 %v783
    %v905 = vpop.f32.mrf.mxu0
    %v906 = vadd.f32 0.0, %v905
    %907 = vmatmul.f32.gmra.mxu0 %v786
    %v908 = vpop.f32.mrf.mxu0
    %v909 = vadd.f32 0.0, %v908
    %910 = vmatmul.f32.gmra.mxu0 %v789
    %v911 = vpop.f32.mrf.mxu0
    %v912 = vadd.f32 0.0, %v911
    %913 = vmatmul.f32.gmra.mxu0 %v792
    %v914 = vpop.f32.mrf.mxu0
    %v915 = vadd.f32 0.0, %v914
    %916 = vmatmul.f32.gmra.mxu0 %v795
    %v917 = vpop.f32.mrf.mxu0
    %v918 = vadd.f32 0.0, %v917
    %919 = vmatmul.f32.gmra.mxu0 %v798
    %v920 = vpop.f32.mrf.mxu0
    %v921 = vadd.f32 0.0, %v920
    %922 = vmatmul.f32.gmra.mxu0 %v801
    %v923 = vpop.f32.mrf.mxu0
    %v924 = vadd.f32 0.0, %v923
    %925 = vdwg.mxu0
    %926 = vmatpush.msra.mxu0 0.0
    %927 = vmatpush.msra.mxu0 0.0
    %928 = vmatpush.msra.mxu0 0.0
    %929 = vmatpush.msra.mxu0 0.0
    %930 = vmatpush.msra.mxu0 0.0
    %931 = vmatpush.msra.mxu0 0.0
    %932 = vmatpush.msra.mxu0 0.0
    %933 = vmatpush.msra.mxu0 0.0
    %934 = vmatpush.msra.mxu0 0.0
    %935 = vmatpush.msra.mxu0 0.0
    %936 = vmatpush.msra.mxu0 0.0
    %937 = vmatpush.msra.mxu0 %v279
    %938 = vmatpush.msra.mxu0 %v231
    %939 = vmatpush.msra.mxu0 %v227
    %940 = vmatpush.msra.mxu0 %v223
    %941 = vmatpush.msra.mxu0 %v219
    %942 = vmatmul.f32.gmra.mxu0 %v780
    %v943 = vpop.f32.mrf.mxu0
    %v944 = vadd.f32 0.0, %v943
    %945 = vmatmul.f32.gmra.mxu0 %v783
    %v946 = vpop.f32.mrf.mxu0
    %v947 = vadd.f32 0.0, %v946
    %948 = vmatmul.f32.gmra.mxu0 %v786
    %v949 = vpop.f32.mrf.mxu0
    %v950 = vadd.f32 0.0, %v949
    %951 = vmatmul.f32.gmra.mxu0 %v789
    %v952 = vpop.f32.mrf.mxu0
    %v953 = vadd.f32 0.0, %v952
    %954 = vmatmul.f32.gmra.mxu0 %v792
    %v955 = vpop.f32.mrf.mxu0
    %v956 = vadd.f32 0.0, %v955
    %957 = vmatmul.f32.gmra.mxu0 %v795
    %v958 = vpop.f32.mrf.mxu0
    %v959 = vadd.f32 0.0, %v958
    %960 = vmatmul.f32.gmra.mxu0 %v798
    %v961 = vpop.f32.mrf.mxu0
    %v962 = vadd.f32 0.0, %v961
    %963 = vmatmul.f32.gmra.mxu0 %v801
    %v964 = vpop.f32.mrf.mxu0
    %v965 = vadd.f32 0.0, %v964
    %966 = vdwg.mxu0
    %v967 = vmul.f32 %v821, %v821
    %v968 = vmul.f32 %v862, %v862
    %v969 = vmul.f32 %v903, %v903
    %v970 = vmul.f32 %v944, %v944
    %v971 = vmul.f32 %v824, %v824
    %v972 = vmul.f32 %v865, %v865
    %v973 = vmul.f32 %v906, %v906
    %v974 = vmul.f32 %v947, %v947
    %v975 = vmul.f32 %v827, %v827
    %v976 = vmul.f32 %v868, %v868
    %v977 = vmul.f32 %v909, %v909
    %v978 = vmul.f32 %v950, %v950
    %v979 = vmul.f32 %v830, %v830
    %v980 = vmul.f32 %v871, %v871
    %v981 = vmul.f32 %v912, %v912
    %v982 = vmul.f32 %v953, %v953
    %v983 = vmul.f32 %v833, %v833
    %v984 = vmul.f32 %v874, %v874
    %v985 = vmul.f32 %v915, %v915
    %v986 = vmul.f32 %v956, %v956
    %v987 = vmul.f32 %v836, %v836
    %v988 = vmul.f32 %v877, %v877
    %v989 = vmul.f32 %v918, %v918
    %v990 = vmul.f32 %v959, %v959
    %v991 = vmul.f32 %v839, %v839
    %v992 = vmul.f32 %v880, %v880
    %v993 = vmul.f32 %v921, %v921
    %v994 = vmul.f32 %v962, %v962
    %v995 = vmul.f32 %v842, %v842
    %v996 = vmul.f32 %v883, %v883
    %v997 = vmul.f32 %v924, %v924
    %v998 = vmul.f32 %v965, %v965
    %v999 = vadd.f32 %v967, %v971
    %v1000 = vadd.f32 %v999, %v975
    %v1001 = vadd.f32 %v1000, %v979
    %v1002 = vadd.f32 %v1001, %v983
    %v1003 = vadd.f32 %v1002, %v987
    %v1004 = vadd.f32 %v1003, %v991
    %v1005 = vadd.f32 %v1004, %v995
    %v1006 = vadd.f32 %v968, %v972
    %v1007 = vadd.f32 %v1006, %v976
    %v1008 = vadd.f32 %v1007, %v980
    %v1009 = vadd.f32 %v1008, %v984
    %v1010 = vadd.f32 %v1009, %v988
    %v1011 = vadd.f32 %v1010, %v992
    %v1012 = vadd.f32 %v1011, %v996
    %v1013 = vadd.f32 %v969, %v973
    %v1014 = vadd.f32 %v1013, %v977
    %v1015 = vadd.f32 %v1014, %v981
    %v1016 = vadd.f32 %v1015, %v985
    %v1017 = vadd.f32 %v1016, %v989
    %v1018 = vadd.f32 %v1017, %v993
    %v1019 = vadd.f32 %v1018, %v997
    %v1020 = vadd.f32 %v970, %v974
    %v1021 = vadd.f32 %v1020, %v978
    %v1022 = vadd.f32 %v1021, %v982
    %v1023 = vadd.f32 %v1022, %v986
    %v1024 = vadd.f32 %v1023, %v990
    %v1025 = vadd.f32 %v1024, %v994
    %v1026 = vadd.f32 %v1025, %v998
    %v1027 = vadd.f32 %v766, %v1005
    %v1028 = vadd.f32 %v767, %v1012
    %v1029 = vadd.f32 %v768, %v1019
    %v1030 = vadd.f32 %v769, %v1026
    %s1031 = scalar_lea.vmem %s1, 192
    %v1032 = vld [vmem:[%s1031] sm:$0xff]
    %v1033 = vld [vmem:[%s1031 + $0x8] sm:$0xff]
    %v1034 = vld [vmem:[%s1031 + $0x10] sm:$0xff]
    %v1035 = vld [vmem:[%s1031 + $0x18] sm:$0xff]
    %v1036 = vld [vmem:[%s1031 + $0x20] sm:$0xff]
    %v1037 = vld [vmem:[%s1031 + $0x28] sm:$0xff]
    %v1038 = vld [vmem:[%s1031 + $0x30] sm:$0xff]
    %v1039 = vld [vmem:[%s1031 + $0x38] sm:$0xff]
    %v1041 = vsel %vm244, %v1032, 0
    %v1044 = vsel %vm244, %v1033, 0
    %v1047 = vsel %vm244, %v1034, 0
    %v1050 = vsel %vm244, %v1035, 0
    %v1053 = vsel %vm244, %v1036, 0
    %v1056 = vsel %vm244, %v1037, 0
    %v1059 = vsel %vm244, %v1038, 0
    %v1062 = vsel %vm244, %v1039, 0
    %1064 = vmatpush.msra.mxu0 0.0
    %1065 = vmatpush.msra.mxu0 0.0
    %1066 = vmatpush.msra.mxu0 0.0
    %1067 = vmatpush.msra.mxu0 0.0
    %1068 = vmatpush.msra.mxu0 0.0
    %1069 = vmatpush.msra.mxu0 0.0
    %1070 = vmatpush.msra.mxu0 0.0
    %1071 = vmatpush.msra.mxu0 0.0
    %1072 = vmatpush.msra.mxu0 0.0
    %1073 = vmatpush.msra.mxu0 0.0
    %1074 = vmatpush.msra.mxu0 0.0
    %1075 = vmatpush.msra.mxu0 %v270
    %1076 = vmatpush.msra.mxu0 %v228
    %1077 = vmatpush.msra.mxu0 %v224
    %1078 = vmatpush.msra.mxu0 %v220
    %1079 = vmatpush.msra.mxu0 %v216
    %1080 = vmatmul.f32.gmra.mxu0 %v1041
    %v1081 = vpop.f32.mrf.mxu0
    %v1082 = vadd.f32 0.0, %v1081
    %1083 = vmatmul.f32.gmra.mxu0 %v1044
    %v1084 = vpop.f32.mrf.mxu0
    %v1085 = vadd.f32 0.0, %v1084
    %1086 = vmatmul.f32.gmra.mxu0 %v1047
    %v1087 = vpop.f32.mrf.mxu0
    %v1088 = vadd.f32 0.0, %v1087
    %1089 = vmatmul.f32.gmra.mxu0 %v1050
    %v1090 = vpop.f32.mrf.mxu0
    %v1091 = vadd.f32 0.0, %v1090
    %1092 = vmatmul.f32.gmra.mxu0 %v1053
    %v1093 = vpop.f32.mrf.mxu0
    %v1094 = vadd.f32 0.0, %v1093
    %1095 = vmatmul.f32.gmra.mxu0 %v1056
    %v1096 = vpop.f32.mrf.mxu0
    %v1097 = vadd.f32 0.0, %v1096
    %1098 = vmatmul.f32.gmra.mxu0 %v1059
    %v1099 = vpop.f32.mrf.mxu0
    %v1100 = vadd.f32 0.0, %v1099
    %1101 = vmatmul.f32.gmra.mxu0 %v1062
    %v1102 = vpop.f32.mrf.mxu0
    %v1103 = vadd.f32 0.0, %v1102
    %1104 = vdwg.mxu0
    %1105 = vmatpush.msra.mxu0 0.0
    %1106 = vmatpush.msra.mxu0 0.0
    %1107 = vmatpush.msra.mxu0 0.0
    %1108 = vmatpush.msra.mxu0 0.0
    %1109 = vmatpush.msra.mxu0 0.0
    %1110 = vmatpush.msra.mxu0 0.0
    %1111 = vmatpush.msra.mxu0 0.0
    %1112 = vmatpush.msra.mxu0 0.0
    %1113 = vmatpush.msra.mxu0 0.0
    %1114 = vmatpush.msra.mxu0 0.0
    %1115 = vmatpush.msra.mxu0 0.0
    %1116 = vmatpush.msra.mxu0 %v273
    %1117 = vmatpush.msra.mxu0 %v229
    %1118 = vmatpush.msra.mxu0 %v225
    %1119 = vmatpush.msra.mxu0 %v221
    %1120 = vmatpush.msra.mxu0 %v217
    %1121 = vmatmul.f32.gmra.mxu0 %v1041
    %v1122 = vpop.f32.mrf.mxu0
    %v1123 = vadd.f32 0.0, %v1122
    %1124 = vmatmul.f32.gmra.mxu0 %v1044
    %v1125 = vpop.f32.mrf.mxu0
    %v1126 = vadd.f32 0.0, %v1125
    %1127 = vmatmul.f32.gmra.mxu0 %v1047
    %v1128 = vpop.f32.mrf.mxu0
    %v1129 = vadd.f32 0.0, %v1128
    %1130 = vmatmul.f32.gmra.mxu0 %v1050
    %v1131 = vpop.f32.mrf.mxu0
    %v1132 = vadd.f32 0.0, %v1131
    %1133 = vmatmul.f32.gmra.mxu0 %v1053
    %v1134 = vpop.f32.mrf.mxu0
    %v1135 = vadd.f32 0.0, %v1134
    %1136 = vmatmul.f32.gmra.mxu0 %v1056
    %v1137 = vpop.f32.mrf.mxu0
    %v1138 = vadd.f32 0.0, %v1137
    %1139 = vmatmul.f32.gmra.mxu0 %v1059
    %v1140 = vpop.f32.mrf.mxu0
    %v1141 = vadd.f32 0.0, %v1140
    %1142 = vmatmul.f32.gmra.mxu0 %v1062
    %v1143 = vpop.f32.mrf.mxu0
    %v1144 = vadd.f32 0.0, %v1143
    %1145 = vdwg.mxu0
    %1146 = vmatpush.msra.mxu0 0.0
    %1147 = vmatpush.msra.mxu0 0.0
    %1148 = vmatpush.msra.mxu0 0.0
    %1149 = vmatpush.msra.mxu0 0.0
    %1150 = vmatpush.msra.mxu0 0.0
    %1151 = vmatpush.msra.mxu0 0.0
    %1152 = vmatpush.msra.mxu0 0.0
    %1153 = vmatpush.msra.mxu0 0.0
    %1154 = vmatpush.msra.mxu0 0.0
    %1155 = vmatpush.msra.mxu0 0.0
    %1156 = vmatpush.msra.mxu0 0.0
    %1157 = vmatpush.msra.mxu0 %v276
    %1158 = vmatpush.msra.mxu0 %v230
    %1159 = vmatpush.msra.mxu0 %v226
    %1160 = vmatpush.msra.mxu0 %v222
    %1161 = vmatpush.msra.mxu0 %v218
    %1162 = vmatmul.f32.gmra.mxu0 %v1041
    %v1163 = vpop.f32.mrf.mxu0
    %v1164 = vadd.f32 0.0, %v1163
    %1165 = vmatmul.f32.gmra.mxu0 %v1044
    %v1166 = vpop.f32.mrf.mxu0
    %v1167 = vadd.f32 0.0, %v1166
    %1168 = vmatmul.f32.gmra.mxu0 %v1047
    %v1169 = vpop.f32.mrf.mxu0
    %v1170 = vadd.f32 0.0, %v1169
    %1171 = vmatmul.f32.gmra.mxu0 %v1050
    %v1172 = vpop.f32.mrf.mxu0
    %v1173 = vadd.f32 0.0, %v1172
    %1174 = vmatmul.f32.gmra.mxu0 %v1053
    %v1175 = vpop.f32.mrf.mxu0
    %v1176 = vadd.f32 0.0, %v1175
    %1177 = vmatmul.f32.gmra.mxu0 %v1056
    %v1178 = vpop.f32.mrf.mxu0
    %v1179 = vadd.f32 0.0, %v1178
    %1180 = vmatmul.f32.gmra.mxu0 %v1059
    %v1181 = vpop.f32.mrf.mxu0
    %v1182 = vadd.f32 0.0, %v1181
    %1183 = vmatmul.f32.gmra.mxu0 %v1062
    %v1184 = vpop.f32.mrf.mxu0
    %v1185 = vadd.f32 0.0, %v1184
    %1186 = vdwg.mxu0
    %1187 = vmatpush.msra.mxu0 0.0
    %1188 = vmatpush.msra.mxu0 0.0
    %1189 = vmatpush.msra.mxu0 0.0
    %1190 = vmatpush.msra.mxu0 0.0
    %1191 = vmatpush.msra.mxu0 0.0
    %1192 = vmatpush.msra.mxu0 0.0
    %1193 = vmatpush.msra.mxu0 0.0
    %1194 = vmatpush.msra.mxu0 0.0
    %1195 = vmatpush.msra.mxu0 0.0
    %1196 = vmatpush.msra.mxu0 0.0
    %1197 = vmatpush.msra.mxu0 0.0
    %1198 = vmatpush.msra.mxu0 %v279
    %1199 = vmatpush.msra.mxu0 %v231
    %1200 = vmatpush.msra.mxu0 %v227
    %1201 = vmatpush.msra.mxu0 %v223
    %1202 = vmatpush.msra.mxu0 %v219
    %1203 = vmatmul.f32.gmra.mxu0 %v1041
    %v1204 = vpop.f32.mrf.mxu0
    %v1205 = vadd.f32 0.0, %v1204
    %1206 = vmatmul.f32.gmra.mxu0 %v1044
    %v1207 = vpop.f32.mrf.mxu0
    %v1208 = vadd.f32 0.0, %v1207
    %1209 = vmatmul.f32.gmra.mxu0 %v1047
    %v1210 = vpop.f32.mrf.mxu0
    %v1211 = vadd.f32 0.0, %v1210
    %1212 = vmatmul.f32.gmra.mxu0 %v1050
    %v1213 = vpop.f32.mrf.mxu0
    %v1214 = vadd.f32 0.0, %v1213
    %1215 = vmatmul.f32.gmra.mxu0 %v1053
    %v1216 = vpop.f32.mrf.mxu0
    %v1217 = vadd.f32 0.0, %v1216
    %1218 = vmatmul.f32.gmra.mxu0 %v1056
    %v1219 = vpop.f32.mrf.mxu0
    %v1220 = vadd.f32 0.0, %v1219
    %1221 = vmatmul.f32.gmra.mxu0 %v1059
    %v1222 = vpop.f32.mrf.mxu0
    %v1223 = vadd.f32 0.0, %v1222
    %1224 = vmatmul.f32.gmra.mxu0 %v1062
    %v1225 = vpop.f32.mrf.mxu0
    %v1226 = vadd.f32 0.0, %v1225
    %1227 = vdwg.mxu0
    %v1228 = vmul.f32 %v1082, %v1082
    %v1229 = vmul.f32 %v1123, %v1123
    %v1230 = vmul.f32 %v1164, %v1164
    %v1231 = vmul.f32 %v1205, %v1205
    %v1232 = vmul.f32 %v1085, %v1085
    %v1233 = vmul.f32 %v1126, %v1126
    %v1234 = vmul.f32 %v1167, %v1167
    %v1235 = vmul.f32 %v1208, %v1208
    %v1236 = vmul.f32 %v1088, %v1088
    %v1237 = vmul.f32 %v1129, %v1129
    %v1238 = vmul.f32 %v1170, %v1170
    %v1239 = vmul.f32 %v1211, %v1211
    %v1240 = vmul.f32 %v1091, %v1091
    %v1241 = vmul.f32 %v1132, %v1132
    %v1242 = vmul.f32 %v1173, %v1173
    %v1243 = vmul.f32 %v1214, %v1214
    %v1244 = vmul.f32 %v1094, %v1094
    %v1245 = vmul.f32 %v1135, %v1135
    %v1246 = vmul.f32 %v1176, %v1176
    %v1247 = vmul.f32 %v1217, %v1217
    %v1248 = vmul.f32 %v1097, %v1097
    %v1249 = vmul.f32 %v1138, %v1138
    %v1250 = vmul.f32 %v1179, %v1179
    %v1251 = vmul.f32 %v1220, %v1220
    %v1252 = vmul.f32 %v1100, %v1100
    %v1253 = vmul.f32 %v1141, %v1141
    %v1254 = vmul.f32 %v1182, %v1182
    %v1255 = vmul.f32 %v1223, %v1223
    %v1256 = vmul.f32 %v1103, %v1103
    %v1257 = vmul.f32 %v1144, %v1144
    %v1258 = vmul.f32 %v1185, %v1185
    %v1259 = vmul.f32 %v1226, %v1226
    %v1260 = vadd.f32 %v1228, %v1232
    %v1261 = vadd.f32 %v1260, %v1236
    %v1262 = vadd.f32 %v1261, %v1240
    %v1263 = vadd.f32 %v1262, %v1244
    %v1264 = vadd.f32 %v1263, %v1248
    %v1265 = vadd.f32 %v1264, %v1252
    %v1266 = vadd.f32 %v1265, %v1256
    %v1267 = vadd.f32 %v1229, %v1233
    %v1268 = vadd.f32 %v1267, %v1237
    %v1269 = vadd.f32 %v1268, %v1241
    %v1270 = vadd.f32 %v1269, %v1245
    %v1271 = vadd.f32 %v1270, %v1249
    %v1272 = vadd.f32 %v1271, %v1253
    %v1273 = vadd.f32 %v1272, %v1257
    %v1274 = vadd.f32 %v1230, %v1234
    %v1275 = vadd.f32 %v1274, %v1238
    %v1276 = vadd.f32 %v1275, %v1242
    %v1277 = vadd.f32 %v1276, %v1246
    %v1278 = vadd.f32 %v1277, %v1250
    %v1279 = vadd.f32 %v1278, %v1254
    %v1280 = vadd.f32 %v1279, %v1258
    %v1281 = vadd.f32 %v1231, %v1235
    %v1282 = vadd.f32 %v1281, %v1239
    %v1283 = vadd.f32 %v1282, %v1243
    %v1284 = vadd.f32 %v1283, %v1247
    %v1285 = vadd.f32 %v1284, %v1251
    %v1286 = vadd.f32 %v1285, %v1255
    %v1287 = vadd.f32 %v1286, %v1259
    %v1288 = vadd.f32 %v1027, %v1266
    %v1289 = vadd.f32 %v1028, %v1273
    %v1290 = vadd.f32 %v1029, %v1280
    %v1291 = vadd.f32 %v1030, %v1287
    %s1292 = scalar_lea.vmem %s1, 256
    %v1293 = vld [vmem:[%s1292] sm:$0xff]
    %v1294 = vld [vmem:[%s1292 + $0x8] sm:$0xff]
    %v1295 = vld [vmem:[%s1292 + $0x10] sm:$0xff]
    %v1296 = vld [vmem:[%s1292 + $0x18] sm:$0xff]
    %v1297 = vld [vmem:[%s1292 + $0x20] sm:$0xff]
    %v1298 = vld [vmem:[%s1292 + $0x28] sm:$0xff]
    %v1299 = vld [vmem:[%s1292 + $0x30] sm:$0xff]
    %v1300 = vld [vmem:[%s1292 + $0x38] sm:$0xff]
    %v1302 = vsel %vm244, %v1293, 0
    %v1305 = vsel %vm244, %v1294, 0
    %v1308 = vsel %vm244, %v1295, 0
    %v1311 = vsel %vm244, %v1296, 0
    %v1314 = vsel %vm244, %v1297, 0
    %v1317 = vsel %vm244, %v1298, 0
    %v1320 = vsel %vm244, %v1299, 0
    %v1323 = vsel %vm244, %v1300, 0
    %1325 = vmatpush.msra.mxu0 0.0
    %1326 = vmatpush.msra.mxu0 0.0
    %1327 = vmatpush.msra.mxu0 0.0
    %1328 = vmatpush.msra.mxu0 0.0
    %1329 = vmatpush.msra.mxu0 0.0
    %1330 = vmatpush.msra.mxu0 0.0
    %1331 = vmatpush.msra.mxu0 0.0
    %1332 = vmatpush.msra.mxu0 0.0
    %1333 = vmatpush.msra.mxu0 0.0
    %1334 = vmatpush.msra.mxu0 0.0
    %1335 = vmatpush.msra.mxu0 0.0
    %1336 = vmatpush.msra.mxu0 %v270
    %1337 = vmatpush.msra.mxu0 %v228
    %1338 = vmatpush.msra.mxu0 %v224
    %1339 = vmatpush.msra.mxu0 %v220
    %1340 = vmatpush.msra.mxu0 %v216
    %1341 = vmatmul.f32.gmra.mxu0 %v1302
    %v1342 = vpop.f32.mrf.mxu0
    %v1343 = vadd.f32 0.0, %v1342
    %1344 = vmatmul.f32.gmra.mxu0 %v1305
    %v1345 = vpop.f32.mrf.mxu0
    %v1346 = vadd.f32 0.0, %v1345
    %1347 = vmatmul.f32.gmra.mxu0 %v1308
    %v1348 = vpop.f32.mrf.mxu0
    %v1349 = vadd.f32 0.0, %v1348
    %1350 = vmatmul.f32.gmra.mxu0 %v1311
    %v1351 = vpop.f32.mrf.mxu0
    %v1352 = vadd.f32 0.0, %v1351
    %1353 = vmatmul.f32.gmra.mxu0 %v1314
    %v1354 = vpop.f32.mrf.mxu0
    %v1355 = vadd.f32 0.0, %v1354
    %1356 = vmatmul.f32.gmra.mxu0 %v1317
    %v1357 = vpop.f32.mrf.mxu0
    %v1358 = vadd.f32 0.0, %v1357
    %1359 = vmatmul.f32.gmra.mxu0 %v1320
    %v1360 = vpop.f32.mrf.mxu0
    %v1361 = vadd.f32 0.0, %v1360
    %1362 = vmatmul.f32.gmra.mxu0 %v1323
    %v1363 = vpop.f32.mrf.mxu0
    %v1364 = vadd.f32 0.0, %v1363
    %1365 = vdwg.mxu0
    %1366 = vmatpush.msra.mxu0 0.0
    %1367 = vmatpush.msra.mxu0 0.0
    %1368 = vmatpush.msra.mxu0 0.0
    %1369 = vmatpush.msra.mxu0 0.0
    %1370 = vmatpush.msra.mxu0 0.0
    %1371 = vmatpush.msra.mxu0 0.0
    %1372 = vmatpush.msra.mxu0 0.0
    %1373 = vmatpush.msra.mxu0 0.0
    %1374 = vmatpush.msra.mxu0 0.0
    %1375 = vmatpush.msra.mxu0 0.0
    %1376 = vmatpush.msra.mxu0 0.0
    %1377 = vmatpush.msra.mxu0 %v273
    %1378 = vmatpush.msra.mxu0 %v229
    %1379 = vmatpush.msra.mxu0 %v225
    %1380 = vmatpush.msra.mxu0 %v221
    %1381 = vmatpush.msra.mxu0 %v217
    %1382 = vmatmul.f32.gmra.mxu0 %v1302
    %v1383 = vpop.f32.mrf.mxu0
    %v1384 = vadd.f32 0.0, %v1383
    %1385 = vmatmul.f32.gmra.mxu0 %v1305
    %v1386 = vpop.f32.mrf.mxu0
    %v1387 = vadd.f32 0.0, %v1386
    %1388 = vmatmul.f32.gmra.mxu0 %v1308
    %v1389 = vpop.f32.mrf.mxu0
    %v1390 = vadd.f32 0.0, %v1389
    %1391 = vmatmul.f32.gmra.mxu0 %v1311
    %v1392 = vpop.f32.mrf.mxu0
    %v1393 = vadd.f32 0.0, %v1392
    %1394 = vmatmul.f32.gmra.mxu0 %v1314
    %v1395 = vpop.f32.mrf.mxu0
    %v1396 = vadd.f32 0.0, %v1395
    %1397 = vmatmul.f32.gmra.mxu0 %v1317
    %v1398 = vpop.f32.mrf.mxu0
    %v1399 = vadd.f32 0.0, %v1398
    %1400 = vmatmul.f32.gmra.mxu0 %v1320
    %v1401 = vpop.f32.mrf.mxu0
    %v1402 = vadd.f32 0.0, %v1401
    %1403 = vmatmul.f32.gmra.mxu0 %v1323
    %v1404 = vpop.f32.mrf.mxu0
    %v1405 = vadd.f32 0.0, %v1404
    %1406 = vdwg.mxu0
    %1407 = vmatpush.msra.mxu0 0.0
    %1408 = vmatpush.msra.mxu0 0.0
    %1409 = vmatpush.msra.mxu0 0.0
    %1410 = vmatpush.msra.mxu0 0.0
    %1411 = vmatpush.msra.mxu0 0.0
    %1412 = vmatpush.msra.mxu0 0.0
    %1413 = vmatpush.msra.mxu0 0.0
    %1414 = vmatpush.msra.mxu0 0.0
    %1415 = vmatpush.msra.mxu0 0.0
    %1416 = vmatpush.msra.mxu0 0.0
    %1417 = vmatpush.msra.mxu0 0.0
    %1418 = vmatpush.msra.mxu0 %v276
    %1419 = vmatpush.msra.mxu0 %v230
    %1420 = vmatpush.msra.mxu0 %v226
    %1421 = vmatpush.msra.mxu0 %v222
    %1422 = vmatpush.msra.mxu0 %v218
    %1423 = vmatmul.f32.gmra.mxu0 %v1302
    %v1424 = vpop.f32.mrf.mxu0
    %v1425 = vadd.f32 0.0, %v1424
    %1426 = vmatmul.f32.gmra.mxu0 %v1305
    %v1427 = vpop.f32.mrf.mxu0
    %v1428 = vadd.f32 0.0, %v1427
    %1429 = vmatmul.f32.gmra.mxu0 %v1308
    %v1430 = vpop.f32.mrf.mxu0
    %v1431 = vadd.f32 0.0, %v1430
    %1432 = vmatmul.f32.gmra.mxu0 %v1311
    %v1433 = vpop.f32.mrf.mxu0
    %v1434 = vadd.f32 0.0, %v1433
    %1435 = vmatmul.f32.gmra.mxu0 %v1314
    %v1436 = vpop.f32.mrf.mxu0
    %v1437 = vadd.f32 0.0, %v1436
    %1438 = vmatmul.f32.gmra.mxu0 %v1317
    %v1439 = vpop.f32.mrf.mxu0
    %v1440 = vadd.f32 0.0, %v1439
    %1441 = vmatmul.f32.gmra.mxu0 %v1320
    %v1442 = vpop.f32.mrf.mxu0
    %v1443 = vadd.f32 0.0, %v1442
    %1444 = vmatmul.f32.gmra.mxu0 %v1323
    %v1445 = vpop.f32.mrf.mxu0
    %v1446 = vadd.f32 0.0, %v1445
    %1447 = vdwg.mxu0
    %1448 = vmatpush.msra.mxu0 0.0
    %1449 = vmatpush.msra.mxu0 0.0
    %1450 = vmatpush.msra.mxu0 0.0
    %1451 = vmatpush.msra.mxu0 0.0
    %1452 = vmatpush.msra.mxu0 0.0
    %1453 = vmatpush.msra.mxu0 0.0
    %1454 = vmatpush.msra.mxu0 0.0
    %1455 = vmatpush.msra.mxu0 0.0
    %1456 = vmatpush.msra.mxu0 0.0
    %1457 = vmatpush.msra.mxu0 0.0
    %1458 = vmatpush.msra.mxu0 0.0
    %1459 = vmatpush.msra.mxu0 %v279
    %1460 = vmatpush.msra.mxu0 %v231
    %1461 = vmatpush.msra.mxu0 %v227
    %1462 = vmatpush.msra.mxu0 %v223
    %1463 = vmatpush.msra.mxu0 %v219
    %1464 = vmatmul.f32.gmra.mxu0 %v1302
    %v1465 = vpop.f32.mrf.mxu0
    %v1466 = vadd.f32 0.0, %v1465
    %1467 = vmatmul.f32.gmra.mxu0 %v1305
    %v1468 = vpop.f32.mrf.mxu0
    %v1469 = vadd.f32 0.0, %v1468
    %1470 = vmatmul.f32.gmra.mxu0 %v1308
    %v1471 = vpop.f32.mrf.mxu0
    %v1472 = vadd.f32 0.0, %v1471
    %1473 = vmatmul.f32.gmra.mxu0 %v1311
    %v1474 = vpop.f32.mrf.mxu0
    %v1475 = vadd.f32 0.0, %v1474
    %1476 = vmatmul.f32.gmra.mxu0 %v1314
    %v1477 = vpop.f32.mrf.mxu0
    %v1478 = vadd.f32 0.0, %v1477
    %1479 = vmatmul.f32.gmra.mxu0 %v1317
    %v1480 = vpop.f32.mrf.mxu0
    %v1481 = vadd.f32 0.0, %v1480
    %1482 = vmatmul.f32.gmra.mxu0 %v1320
    %v1483 = vpop.f32.mrf.mxu0
    %v1484 = vadd.f32 0.0, %v1483
    %1485 = vmatmul.f32.gmra.mxu0 %v1323
    %v1486 = vpop.f32.mrf.mxu0
    %v1487 = vadd.f32 0.0, %v1486
    %1488 = vdwg.mxu0
    %v1489 = vmul.f32 %v1343, %v1343
    %v1490 = vmul.f32 %v1384, %v1384
    %v1491 = vmul.f32 %v1425, %v1425
    %v1492 = vmul.f32 %v1466, %v1466
    %v1493 = vmul.f32 %v1346, %v1346
    %v1494 = vmul.f32 %v1387, %v1387
    %v1495 = vmul.f32 %v1428, %v1428
    %v1496 = vmul.f32 %v1469, %v1469
    %v1497 = vmul.f32 %v1349, %v1349
    %v1498 = vmul.f32 %v1390, %v1390
    %v1499 = vmul.f32 %v1431, %v1431
    %v1500 = vmul.f32 %v1472, %v1472
    %v1501 = vmul.f32 %v1352, %v1352
    %v1502 = vmul.f32 %v1393, %v1393
    %v1503 = vmul.f32 %v1434, %v1434
    %v1504 = vmul.f32 %v1475, %v1475
    %v1505 = vmul.f32 %v1355, %v1355
    %v1506 = vmul.f32 %v1396, %v1396
    %v1507 = vmul.f32 %v1437, %v1437
    %v1508 = vmul.f32 %v1478, %v1478
    %v1509 = vmul.f32 %v1358, %v1358
    %v1510 = vmul.f32 %v1399, %v1399
    %v1511 = vmul.f32 %v1440, %v1440
    %v1512 = vmul.f32 %v1481, %v1481
    %v1513 = vmul.f32 %v1361, %v1361
    %v1514 = vmul.f32 %v1402, %v1402
    %v1515 = vmul.f32 %v1443, %v1443
    %v1516 = vmul.f32 %v1484, %v1484
    %v1517 = vmul.f32 %v1364, %v1364
    %v1518 = vmul.f32 %v1405, %v1405
    %v1519 = vmul.f32 %v1446, %v1446
    %v1520 = vmul.f32 %v1487, %v1487
    %v1521 = vadd.f32 %v1489, %v1493
    %v1522 = vadd.f32 %v1521, %v1497
    %v1523 = vadd.f32 %v1522, %v1501
    %v1524 = vadd.f32 %v1523, %v1505
    %v1525 = vadd.f32 %v1524, %v1509
    %v1526 = vadd.f32 %v1525, %v1513
    %v1527 = vadd.f32 %v1526, %v1517
    %v1528 = vadd.f32 %v1490, %v1494
    %v1529 = vadd.f32 %v1528, %v1498
    %v1530 = vadd.f32 %v1529, %v1502
    %v1531 = vadd.f32 %v1530, %v1506
    %v1532 = vadd.f32 %v1531, %v1510
    %v1533 = vadd.f32 %v1532, %v1514
    %v1534 = vadd.f32 %v1533, %v1518
    %v1535 = vadd.f32 %v1491, %v1495
    %v1536 = vadd.f32 %v1535, %v1499
    %v1537 = vadd.f32 %v1536, %v1503
    %v1538 = vadd.f32 %v1537, %v1507
    %v1539 = vadd.f32 %v1538, %v1511
    %v1540 = vadd.f32 %v1539, %v1515
    %v1541 = vadd.f32 %v1540, %v1519
    %v1542 = vadd.f32 %v1492, %v1496
    %v1543 = vadd.f32 %v1542, %v1500
    %v1544 = vadd.f32 %v1543, %v1504
    %v1545 = vadd.f32 %v1544, %v1508
    %v1546 = vadd.f32 %v1545, %v1512
    %v1547 = vadd.f32 %v1546, %v1516
    %v1548 = vadd.f32 %v1547, %v1520
    %v1549 = vadd.f32 %v1288, %v1527
    %v1550 = vadd.f32 %v1289, %v1534
    %v1551 = vadd.f32 %v1290, %v1541
    %v1552 = vadd.f32 %v1291, %v1548
    %v1553 = vmul.f32 %v1549, 0.027777778
    %v1554 = vmul.f32 %v1550, 0.027777778
    %v1555 = vmul.f32 %v1551, 0.027777778
    %v1556 = vmul.f32 %v1552, 0.027777778
    %v1557 = vsub.f32 0.0, %v1553
    %v1558 = vsub.f32 0.0, %v1554
    %v1559 = vsub.f32 0.0, %v1555
    %v1560 = vsub.f32 0.0, %v1556
    %v1561 = vmul.f32 %v1557, 1.442695
    %v1562 = vpow.pop %v1561
    %v1563 = vmul.f32 %v1558, 1.442695
    %v1564 = vpow.pop %v1563
    %v1565 = vmul.f32 %v1559, 1.442695
    %v1566 = vpow.pop %v1565
    %v1567 = vmul.f32 %v1560, 1.442695
    %v1568 = vpow.pop %v1567
    %v1569 = vsub.f32 %v1562, 0.36787945
    %v1570 = vsub.f32 %v1564, 0.36787945
    %v1571 = vsub.f32 %v1566, 0.36787945
    %v1572 = vsub.f32 %v1568, 0.36787945
    %v1573 = vmul.f32 %v1569, 1.5819767
    %v1574 = vmul.f32 %v1570, 1.5819767
    %v1575 = vmul.f32 %v1571, 1.5819767
    %v1576 = vmul.f32 %v1572, 1.5819767
    %v1577 = vsub.f32 %v1573, 0.5
    %v1578 = vsub.f32 %v1574, 0.5
    %v1579 = vsub.f32 %v1575, 0.5
    %v1580 = vsub.f32 %v1576, 0.5
    %1581 = vst [vmem:[#allocation2] sm:$0xff] %v1577
    %1582 = vst [vmem:[#allocation2 + $0x8] sm:$0xff] %v1578
    %1583 = vst [vmem:[#allocation2 + $0x10] sm:$0xff] %v1579
    %1584 = vst [vmem:[#allocation2 + $0x18] sm:$0xff] %v1580
    // Predicated region
    $region10: #{tpu_custom_call.1} parent=1 // pred_check
      _
    $region11: #{tpu_custom_call.1} parent=1 // pred_check_branch
      %1586 = sbr.rel (0) target = $region13
    $region12: #{tpu_custom_call.1} parent=1 // pred_region
      %1588 = vsyncadd [#allocation3], 0
      %s1590 = sshll.u32 [#allocation2], 4
      %s1591 = int_to_ptr.vmem [resolvable:$true] %s1590
      %s1592 = sshll.u32 %s2, 4
      %s1593 = int_to_ptr.hbm [resolvable:$true] %s1592
      %1595 = dma.vmem_to_hbm [thread:$0]  %s1591, 512, %s1593, [#allocation3]
    $region13: #{tpu_custom_call.1} parent=1 // pred_fallthru
      _
    // Predicated region
    $region14: #{tpu_custom_call.1} parent=1 // pred_check
      _
    $region15: #{tpu_custom_call.1} parent=1 // pred_check_branch
      %1597 = sbr.rel (0) target = $region17
    $region16: #{tpu_custom_call.1} parent=1 // pred_region
      %1599 = dma.done [#allocation3], 512
    $region17: #{tpu_custom_call.1} parent=1 // pred_fallthru
      _
    %1600 = vsyncpa [#allocation3], 1

</llo_original>
